<compile_context>
chip_gen: v5e
topology: v5e:2x2
jax: 0.10.0
libtpu: 0.0.40
codegen_flags: <defaults>
</compile_context>

<pallas_src>
import jax
import jax.numpy as jnp
from jax.experimental import pallas as pl
from jax.experimental.pallas import tpu as pltpu


def _round_up(x, m):
    return (x + m - 1) // m * m


_COMPILER_PARAMS = pltpu.CompilerParams(dimension_semantics=("parallel",))


def _pick_lane_tile(m, cap=2048):
    """Tile for the lane (minor) axis.

    * m <= 512: one full-extent block (tiny problem; splitting only adds
      per-step pipeline overhead).  This is the path the demo shapes take.
    * m  > 512: a multiple of 128 (lane-dense, unmasked stores), capped for
      VMEM, and no larger than ~m/2 so the "parallel" grid has >= 2 steps and
      both v7x TensorCores get work.  A ragged last tile is handled by Pallas'
      masked out-of-bounds blocks (no pad materialization).
    """
    if m <= 512:
        return m
    return max(128, min(cap, _round_up(pl.cdiv(m, 2), 128)))


# ---------------------------------------------------------------------------
# Pallas kernels
# ---------------------------------------------------------------------------
def _conv_relu_pool_kernel(p_ref, w_ref, b_ref, o_ref):
    """Fused conv (4 pool-quadrant matmuls) + 2x2 max-pool + bias + ReLU.

    Transposed layout: the big batch*spatial dim M sits on lanes.

    p_ref: (4, K, TM)  bf16  im2col patches, one slab per pool quadrant
    w_ref: (Cout, K)   bf16  conv weights (PyTorch (Cout,Cin,KH,KW) flattened)
    b_ref: (Cout, 1)   f32   bias column (broadcast along lanes)
    o_ref: (Cout, TM)  bf16  pooled output tile (lane-dense)
    """
    w = w_ref[...]
    acc = jnp.dot(w, p_ref[0], preferred_element_type=jnp.float32)
    for q in range(1, 4):                               # max over pool quadrants
        acc = jnp.maximum(acc, jnp.dot(w, p_ref[q],
                                       preferred_element_type=jnp.float32))
    # bias + ReLU hoisted out of the quadrant loop (ReLU monotone).
    o_ref[...] = jnp.maximum(acc + b_ref[...], 0.0).astype(o_ref.dtype)


def _fc_head_kernel(x_ref, w1_ref, b1_ref, w2_ref, b2_ref, w3_ref, b3_ref, o_ref):
    """fc1+ReLU -> fc2+ReLU -> fc3, fully fused, transposed (batch on lanes).

    Weights keep the PyTorch (out, in) layout and stay VMEM-resident for the
    whole call; intermediates never leave VMEM.  Dropout (eval) is identity.
    """
    h = jnp.dot(w1_ref[...], x_ref[...], preferred_element_type=jnp.float32)
    h = jnp.maximum(h + b1_ref[...], 0.0)
    h = jnp.dot(w2_ref[...], h.astype(jnp.bfloat16), preferred_element_type=jnp.float32)
    h = jnp.maximum(h + b2_ref[...], 0.0)
    h = jnp.dot(w3_ref[...], h.astype(jnp.bfloat16), preferred_element_type=jnp.float32)
    o_ref[...] = h + b3_ref[...]


# ---------------------------------------------------------------------------
# Wrappers
# ---------------------------------------------------------------------------
def _quadrant_patches(x_cnhw, kh, kw, *, batch_minor):
    """Transposed im2col grouped by 2x2-pool quadrant.

    x_cnhw: (C, N, H, W).  Returns P of shape (4, C*kh*kw, M) with
      P[2*dr+dc, ci*kh*kw + i*kw + j, m] = x[ci, n, 2r+dr+i, 2c+dc+j]
    where m = (n*PH + r)*PW + c   (batch_minor=False)
       or m = (r*PW + c)*N + n    (batch_minor=True),
    so relu(max_q(W @ P_q) + b) is exactly maxpool2x2(relu(conv(x))),
    transposed (channels on sublanes, batch*space on lanes).
    """
    C, N, H, W = x_cnhw.shape
    OH, OW = H - kh + 1, W - kw + 1
    PH, PW = OH // 2, OW // 2
    quads = []
    for dr in range(2):
        for dc in range(2):
            taps = []
            for i in range(kh):
                for j in range(kw):
                    taps.append(x_cnhw[:, :, dr + i::2, dc + j::2][:, :, :PH, :PW])
            q = jnp.stack(taps, axis=1)                 # (C, kh*kw, N, PH, PW)
            if batch_minor:
                q = jnp.transpose(q, (0, 1, 3, 4, 2))   # (C, kh*kw, PH, PW, N)
            quads.append(q.reshape(C * kh * kw, -1))
    return jnp.stack(quads, axis=0), (N, PH, PW)


def pallas_conv_relu_pool(p, w_mat, b_col, *, lane_tile=2048):
    """valid 5x5 conv (stride 1) + bias + ReLU + 2x2/2 max-pool, one pallas_call.

    p: (4, K, M) bf16 quadrant patches; w_mat: (Cout, K) bf16; b_col: (Cout,1) f32.
    Returns (Cout, M) bf16 with M = batch*pooled_spatial on lanes.
    """
    _, K, M = p.shape
    Cout = w_mat.shape[0]
    tm = _pick_lane_tile(M, lane_tile)
    return pl.pallas_call(
        _conv_relu_pool_kernel,
        out_shape=jax.ShapeDtypeStruct((Cout, M), jnp.bfloat16),
        grid=(pl.cdiv(M, tm),),
        in_specs=[
            pl.BlockSpec((4, K, tm), lambda m: (0, 0, m)),   # patches: lane-tiled
            pl.BlockSpec((Cout, K), lambda m: (0, 0)),       # weights: VMEM-resident
            pl.BlockSpec((Cout, 1), lambda m: (0, 0)),       # bias column
        ],
        out_specs=pl.BlockSpec((Cout, tm), lambda m: (0, m)),
        compiler_params=_COMPILER_PARAMS,
    )(p, w_mat, b_col)


def pallas_fc_head(x_t, w1, b1, w2, b2, w3, b3, *, lane_tile=2048):
    """fc1 -> ReLU -> fc2 -> ReLU -> fc3 fused; x_t is (in_features, N)."""
    K, N = x_t.shape
    n_out = w3.shape[0]
    tn = _pick_lane_tile(N, lane_tile)
    return pl.pallas_call(
        _fc_head_kernel,
        out_shape=jax.ShapeDtypeStruct((n_out, N), jnp.float32),
        grid=(pl.cdiv(N, tn),),
        in_specs=[
            pl.BlockSpec((K, tn), lambda m: (0, m)),
            pl.BlockSpec(w1.shape, lambda m: (0, 0)),
            pl.BlockSpec(b1.shape, lambda m: (0, 0)),
            pl.BlockSpec(w2.shape, lambda m: (0, 0)),
            pl.BlockSpec(b2.shape, lambda m: (0, 0)),
            pl.BlockSpec(w3.shape, lambda m: (0, 0)),
            pl.BlockSpec(b3.shape, lambda m: (0, 0)),
        ],
        out_specs=pl.BlockSpec((n_out, tn), lambda m: (0, m)),
        compiler_params=_COMPILER_PARAMS,
    )(x_t, w1, b1, w2, b2, w3, b3)


# ---------------------------------------------------------------------------
# Parameters
# ---------------------------------------------------------------------------
def init_params(key, n_channels, n_classes):
    """PyTorch-default-style init (uniform +-1/sqrt(fan_in)), PyTorch layouts."""
    ks = jax.random.split(key, 10)

    def unif(k, shape, fan_in):
        bound = 1.0 / jnp.sqrt(jnp.float32(fan_in))
        return jax.random.uniform(k, shape, jnp.float32, -bound, bound)

    return {
        "conv1_w": unif(ks[0], (6, n_channels, 5, 5), n_channels * 25),
        "conv1_b": unif(ks[1], (6,), n_channels * 25),
        "conv2_w": unif(ks[2], (16, 6, 5, 5), 6 * 25),
        "conv2_b": unif(ks[3], (16,), 6 * 25),
        "fc1_w": unif(ks[4], (100, 16 * 5 * 5), 16 * 5 * 5),   # nn.Linear: (out, in)
        "fc1_b": unif(ks[5], (100,), 16 * 5 * 5),
        "fc2_w": unif(ks[6], (20, 100), 100),
        "fc2_b": unif(ks[7], (20,), 100),
        "fc3_w": unif(ks[8], (n_classes, 20), 20),
        "fc3_b": unif(ks[9], (n_classes,), 20),
    }


def prepare_params(params):
    """One-time dtype/shape prep (hoisted out of the per-call path).

    In the transposed formulation no weight transpose is needed at all:
      conv (Cout,Cin,KH,KW) -> (Cout, Cin*KH*KW) is a plain reshape matching
      the (ci,i,j) patch-row ordering; fc weights keep PyTorch (out,in);
      biases become (out,1) f32 columns broadcast along lanes in-kernel.
    """
    def conv_w(w):
        return w.reshape(w.shape[0], -1).astype(jnp.bfloat16)

    def fc_w(w):
        return w.astype(jnp.bfloat16)

    def bias(b):
        return b.reshape(-1, 1).astype(jnp.float32)

    return {
        "conv1_w": conv_w(params["conv1_w"]), "conv1_b": bias(params["conv1_b"]),
        "conv2_w": conv_w(params["conv2_w"]), "conv2_b": bias(params["conv2_b"]),
        "fc1_w": fc_w(params["fc1_w"]), "fc1_b": bias(params["fc1_b"]),
        "fc2_w": fc_w(params["fc2_w"]), "fc2_b": bias(params["fc2_b"]),
        "fc3_w": fc_w(params["fc3_w"]), "fc3_b": bias(params["fc3_b"]),
    }


# ---------------------------------------------------------------------------
# Forward pass (matches BinaryClassifier.forward in eval mode)
# ---------------------------------------------------------------------------
def binary_classifier_forward(prepared, x_nchw):
    # channel-major (C, N, H, W); no NCHW->NHWC conversion in this layout.
    x = jnp.transpose(x_nchw, (1, 0, 2, 3)).astype(jnp.bfloat16)

    # conv1 + ReLU + pool  -> (6, N*14*14), columns ordered (n, r, c)
    p1, (n, ph1, pw1) = _quadrant_patches(x, 5, 5, batch_minor=False)
    o1 = pallas_conv_relu_pool(p1, prepared["conv1_w"], prepared["conv1_b"])
    o1 = o1.reshape(6, n, ph1, pw1)            # (6, N, 14, 14), pure reshape

    # conv2 + ReLU + pool  -> (16, 5*5*N), columns ordered (r, c, n) so the
    # PyTorch flatten (c, h, w) below is a pure reshape — no transpose.
    p2, (_, ph2, pw2) = _quadrant_patches(o1, 5, 5, batch_minor=True)
    o2 = pallas_conv_relu_pool(p2, prepared["conv2_w"], prepared["conv2_b"])

    # flatten + fc1 -> ReLU -> [dropout=id] -> fc2 -> ReLU -> [dropout=id] -> fc3
    x_fc = o2.reshape(16 * ph2 * pw2, n)       # (400, N), PyTorch flatten order
    logits_t = pallas_fc_head(x_fc, prepared["fc1_w"], prepared["fc1_b"],
                              prepared["fc2_w"], prepared["fc2_b"],
                              prepared["fc3_w"], prepared["fc3_b"])
    return jnp.transpose(logits_t)             # (N, n_classes)


if __name__ == "__main__":
    key = jax.random.PRNGKey(0)
    k_param, k_x = jax.random.split(key)

    # Input must be 32x32 so the flatten sees 16*5*5 features (as the module implies).
    N, n_channels, n_classes = 2, 3, 2
    x = jax.random.normal(k_x, (N, n_channels, 32, 32), jnp.float32)

    params = init_params(k_param, n_channels, n_classes)
    prepared = prepare_params(params)          # one-time weight layout/dtype prep

    fwd = jax.jit(binary_classifier_forward)
    out = jax.block_until_ready(fwd(prepared, x))

    assert out.shape == (N, n_classes)
    assert bool(jnp.all(jnp.isfinite(out)))
    print("KERNEL_OK")
</pallas_src>

<mosaic_0001>
module attributes {stable_mosaic.version = 11 : i64} {
  func.func @_conv_relu_pool_kernel(%arg0: i32, %arg1: memref<4x75x392xbf16, #tpu.memory_space<vmem>>, %arg2: memref<6x75xbf16, #tpu.memory_space<vmem>>, %arg3: memref<6x1xf32, #tpu.memory_space<vmem>>, %arg4: memref<6x392xbf16, #tpu.memory_space<vmem>>) attributes {dimension_semantics = [#tpu.dimension_semantics<parallel>], iteration_bounds = array<i64: 1>, scalar_prefetch = 0 : i64, scratch_operands = 0 : i64, tpu.core_type = #tpu.core_type<tc>, window_params = [{transform_indices = @transform_0, window_bounds = array<i64: 4, 75, 392>}, {pipeline_mode = #tpu.pipeline_mode<synchronous>, transform_indices = @transform_1, window_bounds = array<i64: 6, 75>}, {pipeline_mode = #tpu.pipeline_mode<synchronous>, transform_indices = @transform_2, window_bounds = array<i64: 6, 1>}, {transform_indices = @transform_3, window_bounds = array<i64: 6, 392>}]} {
    %c0 = arith.constant 0 : index
    %c0_0 = arith.constant 0 : index
    %0 = vector.load %arg2[%c0, %c0_0] : memref<6x75xbf16, #tpu.memory_space<vmem>>, vector<6x75xbf16>
    %c0_1 = arith.constant 0 : index
    %c0_2 = arith.constant 0 : index
    %c0_3 = arith.constant 0 : index
    %1 = vector.load %arg1[%c0_1, %c0_2, %c0_3] : memref<4x75x392xbf16, #tpu.memory_space<vmem>>, vector<1x75x392xbf16>
    %2 = vector.shape_cast %1 : vector<1x75x392xbf16> to vector<75x392xbf16>
    %cst = arith.constant dense<0.000000e+00> : vector<6x392xf32>
    %3 = tpu.matmul %0, %2, %cst {dimension_numbers = #tpu.dot_dimension_numbers<[1], [0], [0], [1], [0, 0, 1, 1], [], []>} : vector<6x75xbf16>, vector<75x392xbf16>, vector<6x392xf32> -> vector<6x392xf32>
    %c1 = arith.constant 1 : index
    %c0_4 = arith.constant 0 : index
    %c0_5 = arith.constant 0 : index
    %4 = vector.load %arg1[%c1, %c0_4, %c0_5] : memref<4x75x392xbf16, #tpu.memory_space<vmem>>, vector<1x75x392xbf16>
    %5 = vector.shape_cast %4 : vector<1x75x392xbf16> to vector<75x392xbf16>
    %cst_6 = arith.constant dense<0.000000e+00> : vector<6x392xf32>
    %6 = tpu.matmul %0, %5, %cst_6 {dimension_numbers = #tpu.dot_dimension_numbers<[1], [0], [0], [1], [0, 0, 1, 1], [], []>} : vector<6x75xbf16>, vector<75x392xbf16>, vector<6x392xf32> -> vector<6x392xf32>
    %7 = arith.maximumf %3, %6 : vector<6x392xf32>
    %c2 = arith.constant 2 : index
    %c0_7 = arith.constant 0 : index
    %c0_8 = arith.constant 0 : index
    %8 = vector.load %arg1[%c2, %c0_7, %c0_8] : memref<4x75x392xbf16, #tpu.memory_space<vmem>>, vector<1x75x392xbf16>
    %9 = vector.shape_cast %8 : vector<1x75x392xbf16> to vector<75x392xbf16>
    %cst_9 = arith.constant dense<0.000000e+00> : vector<6x392xf32>
    %10 = tpu.matmul %0, %9, %cst_9 {dimension_numbers = #tpu.dot_dimension_numbers<[1], [0], [0], [1], [0, 0, 1, 1], [], []>} : vector<6x75xbf16>, vector<75x392xbf16>, vector<6x392xf32> -> vector<6x392xf32>
    %11 = arith.maximumf %7, %10 : vector<6x392xf32>
    %c3 = arith.constant 3 : index
    %c0_10 = arith.constant 0 : index
    %c0_11 = arith.constant 0 : index
    %12 = vector.load %arg1[%c3, %c0_10, %c0_11] : memref<4x75x392xbf16, #tpu.memory_space<vmem>>, vector<1x75x392xbf16>
    %13 = vector.shape_cast %12 : vector<1x75x392xbf16> to vector<75x392xbf16>
    %cst_12 = arith.constant dense<0.000000e+00> : vector<6x392xf32>
    %14 = tpu.matmul %0, %13, %cst_12 {dimension_numbers = #tpu.dot_dimension_numbers<[1], [0], [0], [1], [0, 0, 1, 1], [], []>} : vector<6x75xbf16>, vector<75x392xbf16>, vector<6x392xf32> -> vector<6x392xf32>
    %15 = arith.maximumf %11, %14 : vector<6x392xf32>
    %c0_13 = arith.constant 0 : index
    %c0_14 = arith.constant 0 : index
    %16 = vector.load %arg3[%c0_13, %c0_14] : memref<6x1xf32, #tpu.memory_space<vmem>>, vector<6x1xf32>
    %17 = vector.broadcast %16 : vector<6x1xf32> to vector<6x392xf32>
    %18 = arith.addf %15, %17 : vector<6x392xf32>
    %cst_15 = arith.constant 0.000000e+00 : f32
    %19 = vector.broadcast %cst_15 : f32 to vector<6x392xf32>
    %20 = arith.maximumf %18, %19 : vector<6x392xf32>
    %21 = arith.truncf %20 : vector<6x392xf32> to vector<6x392xbf16>
    %c0_16 = arith.constant 0 : index
    %c0_17 = arith.constant 0 : index
    %22 = vector.load %arg4[%c0_16, %c0_17] : memref<6x392xbf16, #tpu.memory_space<vmem>>, vector<6x392xbf16>
    tpu.vector_store %arg4[%c0_16, %c0_17], %21 {strides = array<i32>} : memref<6x392xbf16, #tpu.memory_space<vmem>>, vector<6x392xbf16>,
    return
  }
  func.func @transform_0(%arg0: i32) -> (i32, i32, i32) {
    %c0_i32 = arith.constant 0 : i32
    %c0_i32_0 = arith.constant 0 : i32
    %c0_i32_1 = arith.constant 0 : i32
    return %c0_i32, %c0_i32_0, %arg0 : i32, i32, i32
  }
  func.func @transform_1(%arg0: i32) -> (i32, i32) {
    %c0_i32 = arith.constant 0 : i32
    %c0_i32_0 = arith.constant 0 : i32
    %c0_i32_1 = arith.constant 0 : i32
    return %c0_i32, %c0_i32_0 : i32, i32
  }
  func.func @transform_2(%arg0: i32) -> (i32, i32) {
    %c0_i32 = arith.constant 0 : i32
    %c0_i32_0 = arith.constant 0 : i32
    %c0_i32_1 = arith.constant 0 : i32
    return %c0_i32, %c0_i32_0 : i32, i32
  }
  func.func @transform_3(%arg0: i32) -> (i32, i32) {
    %c0_i32 = arith.constant 0 : i32
    %c0_i32_0 = arith.constant 0 : i32
    return %c0_i32, %arg0 : i32, i32
  }
}

module attributes {stable_mosaic.version = 11 : i64} {
  func.func @_conv_relu_pool_kernel(%arg0: i32, %arg1: memref<4x150x50xbf16, #tpu.memory_space<vmem>>, %arg2: memref<16x150xbf16, #tpu.memory_space<vmem>>, %arg3: memref<16x1xf32, #tpu.memory_space<vmem>>, %arg4: memref<16x50xbf16, #tpu.memory_space<vmem>>) attributes {dimension_semantics = [#tpu.dimension_semantics<parallel>], iteration_bounds = array<i64: 1>, scalar_prefetch = 0 : i64, scratch_operands = 0 : i64, tpu.core_type = #tpu.core_type<tc>, window_params = [{transform_indices = @transform_0, window_bounds = array<i64: 4, 150, 50>}, {pipeline_mode = #tpu.pipeline_mode<synchronous>, transform_indices = @transform_1, window_bounds = array<i64: 16, 150>}, {pipeline_mode = #tpu.pipeline_mode<synchronous>, transform_indices = @transform_2, window_bounds = array<i64: 16, 1>}, {transform_indices = @transform_3, window_bounds = array<i64: 16, 50>}]} {
    %c0 = arith.constant 0 : index
    %c0_0 = arith.constant 0 : index
    %0 = vector.load %arg2[%c0, %c0_0] : memref<16x150xbf16, #tpu.memory_space<vmem>>, vector<16x150xbf16>
    %c0_1 = arith.constant 0 : index
    %c0_2 = arith.constant 0 : index
    %c0_3 = arith.constant 0 : index
    %1 = vector.load %arg1[%c0_1, %c0_2, %c0_3] : memref<4x150x50xbf16, #tpu.memory_space<vmem>>, vector<1x150x50xbf16>
    %2 = vector.shape_cast %1 : vector<1x150x50xbf16> to vector<150x50xbf16>
    %cst = arith.constant dense<0.000000e+00> : vector<16x50xf32>
    %3 = tpu.matmul %0, %2, %cst {dimension_numbers = #tpu.dot_dimension_numbers<[1], [0], [0], [1], [0, 0, 1, 1], [], []>} : vector<16x150xbf16>, vector<150x50xbf16>, vector<16x50xf32> -> vector<16x50xf32>
    %c1 = arith.constant 1 : index
    %c0_4 = arith.constant 0 : index
    %c0_5 = arith.constant 0 : index
    %4 = vector.load %arg1[%c1, %c0_4, %c0_5] : memref<4x150x50xbf16, #tpu.memory_space<vmem>>, vector<1x150x50xbf16>
    %5 = vector.shape_cast %4 : vector<1x150x50xbf16> to vector<150x50xbf16>
    %cst_6 = arith.constant dense<0.000000e+00> : vector<16x50xf32>
    %6 = tpu.matmul %0, %5, %cst_6 {dimension_numbers = #tpu.dot_dimension_numbers<[1], [0], [0], [1], [0, 0, 1, 1], [], []>} : vector<16x150xbf16>, vector<150x50xbf16>, vector<16x50xf32> -> vector<16x50xf32>
    %7 = arith.maximumf %3, %6 : vector<16x50xf32>
    %c2 = arith.constant 2 : index
    %c0_7 = arith.constant 0 : index
    %c0_8 = arith.constant 0 : index
    %8 = vector.load %arg1[%c2, %c0_7, %c0_8] : memref<4x150x50xbf16, #tpu.memory_space<vmem>>, vector<1x150x50xbf16>
    %9 = vector.shape_cast %8 : vector<1x150x50xbf16> to vector<150x50xbf16>
    %cst_9 = arith.constant dense<0.000000e+00> : vector<16x50xf32>
    %10 = tpu.matmul %0, %9, %cst_9 {dimension_numbers = #tpu.dot_dimension_numbers<[1], [0], [0], [1], [0, 0, 1, 1], [], []>} : vector<16x150xbf16>, vector<150x50xbf16>, vector<16x50xf32> -> vector<16x50xf32>
    %11 = arith.maximumf %7, %10 : vector<16x50xf32>
    %c3 = arith.constant 3 : index
    %c0_10 = arith.constant 0 : index
    %c0_11 = arith.constant 0 : index
    %12 = vector.load %arg1[%c3, %c0_10, %c0_11] : memref<4x150x50xbf16, #tpu.memory_space<vmem>>, vector<1x150x50xbf16>
    %13 = vector.shape_cast %12 : vector<1x150x50xbf16> to vector<150x50xbf16>
    %cst_12 = arith.constant dense<0.000000e+00> : vector<16x50xf32>
    %14 = tpu.matmul %0, %13, %cst_12 {dimension_numbers = #tpu.dot_dimension_numbers<[1], [0], [0], [1], [0, 0, 1, 1], [], []>} : vector<16x150xbf16>, vector<150x50xbf16>, vector<16x50xf32> -> vector<16x50xf32>
    %15 = arith.maximumf %11, %14 : vector<16x50xf32>
    %c0_13 = arith.constant 0 : index
    %c0_14 = arith.constant 0 : index
    %16 = vector.load %arg3[%c0_13, %c0_14] : memref<16x1xf32, #tpu.memory_space<vmem>>, vector<16x1xf32>
    %17 = vector.broadcast %16 : vector<16x1xf32> to vector<16x50xf32>
    %18 = arith.addf %15, %17 : vector<16x50xf32>
    %cst_15 = arith.constant 0.000000e+00 : f32
    %19 = vector.broadcast %cst_15 : f32 to vector<16x50xf32>
    %20 = arith.maximumf %18, %19 : vector<16x50xf32>
    %21 = arith.truncf %20 : vector<16x50xf32> to vector<16x50xbf16>
    %c0_16 = arith.constant 0 : index
    %c0_17 = arith.constant 0 : index
    %22 = vector.load %arg4[%c0_16, %c0_17] : memref<16x50xbf16, #tpu.memory_space<vmem>>, vector<16x50xbf16>
    tpu.vector_store %arg4[%c0_16, %c0_17], %21 {strides = array<i32>} : memref<16x50xbf16, #tpu.memory_space<vmem>>, vector<16x50xbf16>,
    return
  }
  func.func @transform_0(%arg0: i32) -> (i32, i32, i32) {
    %c0_i32 = arith.constant 0 : i32
    %c0_i32_0 = arith.constant 0 : i32
    %c0_i32_1 = arith.constant 0 : i32
    return %c0_i32, %c0_i32_0, %arg0 : i32, i32, i32
  }
  func.func @transform_1(%arg0: i32) -> (i32, i32) {
    %c0_i32 = arith.constant 0 : i32
    %c0_i32_0 = arith.constant 0 : i32
    %c0_i32_1 = arith.constant 0 : i32
    return %c0_i32, %c0_i32_0 : i32, i32
  }
  func.func @transform_2(%arg0: i32) -> (i32, i32) {
    %c0_i32 = arith.constant 0 : i32
    %c0_i32_0 = arith.constant 0 : i32
    %c0_i32_1 = arith.constant 0 : i32
    return %c0_i32, %c0_i32_0 : i32, i32
  }
  func.func @transform_3(%arg0: i32) -> (i32, i32) {
    %c0_i32 = arith.constant 0 : i32
    %c0_i32_0 = arith.constant 0 : i32
    return %c0_i32, %arg0 : i32, i32
  }
}

module attributes {stable_mosaic.version = 11 : i64} {
  func.func @_fc_head_kernel(%arg0: i32, %arg1: memref<400x2xbf16, #tpu.memory_space<vmem>>, %arg2: memref<100x400xbf16, #tpu.memory_space<vmem>>, %arg3: memref<100x1xf32, #tpu.memory_space<vmem>>, %arg4: memref<20x100xbf16, #tpu.memory_space<vmem>>, %arg5: memref<20x1xf32, #tpu.memory_space<vmem>>, %arg6: memref<2x20xbf16, #tpu.memory_space<vmem>>, %arg7: memref<2x1xf32, #tpu.memory_space<vmem>>, %arg8: memref<2x2xf32, #tpu.memory_space<vmem>>) attributes {dimension_semantics = [#tpu.dimension_semantics<parallel>], iteration_bounds = array<i64: 1>, scalar_prefetch = 0 : i64, scratch_operands = 0 : i64, tpu.core_type = #tpu.core_type<tc>, window_params = [{transform_indices = @transform_0, window_bounds = array<i64: 400, 2>}, {pipeline_mode = #tpu.pipeline_mode<synchronous>, transform_indices = @transform_1, window_bounds = array<i64: 100, 400>}, {pipeline_mode = #tpu.pipeline_mode<synchronous>, transform_indices = @transform_2, window_bounds = array<i64: 100, 1>}, {pipeline_mode = #tpu.pipeline_mode<synchronous>, transform_indices = @transform_3, window_bounds = array<i64: 20, 100>}, {pipeline_mode = #tpu.pipeline_mode<synchronous>, transform_indices = @transform_4, window_bounds = array<i64: 20, 1>}, {pipeline_mode = #tpu.pipeline_mode<synchronous>, transform_indices = @transform_5, window_bounds = array<i64: 2, 20>}, {pipeline_mode = #tpu.pipeline_mode<synchronous>, transform_indices = @transform_6, window_bounds = array<i64: 2, 1>}, {transform_indices = @transform_7, window_bounds = array<i64: 2, 2>}]} {
    %c0 = arith.constant 0 : index
    %c0_0 = arith.constant 0 : index
    %0 = vector.load %arg2[%c0, %c0_0] : memref<100x400xbf16, #tpu.memory_space<vmem>>, vector<100x400xbf16>
    %c0_1 = arith.constant 0 : index
    %c0_2 = arith.constant 0 : index
    %1 = vector.load %arg1[%c0_1, %c0_2] : memref<400x2xbf16, #tpu.memory_space<vmem>>, vector<400x2xbf16>
    %cst = arith.constant dense<0.000000e+00> : vector<100x2xf32>
    %2 = tpu.matmul %0, %1, %cst {dimension_numbers = #tpu.dot_dimension_numbers<[1], [0], [0], [1], [0, 0, 1, 1], [], []>} : vector<100x400xbf16>, vector<400x2xbf16>, vector<100x2xf32> -> vector<100x2xf32>
    %c0_3 = arith.constant 0 : index
    %c0_4 = arith.constant 0 : index
    %3 = vector.load %arg3[%c0_3, %c0_4] : memref<100x1xf32, #tpu.memory_space<vmem>>, vector<100x1xf32>
    %4 = vector.broadcast %3 : vector<100x1xf32> to vector<100x2xf32>
    %5 = arith.addf %2, %4 : vector<100x2xf32>
    %cst_5 = arith.constant 0.000000e+00 : f32
    %6 = vector.broadcast %cst_5 : f32 to vector<100x2xf32>
    %7 = arith.maximumf %5, %6 : vector<100x2xf32>
    %c0_6 = arith.constant 0 : index
    %c0_7 = arith.constant 0 : index
    %8 = vector.load %arg4[%c0_6, %c0_7] : memref<20x100xbf16, #tpu.memory_space<vmem>>, vector<20x100xbf16>
    %9 = arith.truncf %7 : vector<100x2xf32> to vector<100x2xbf16>
    %cst_8 = arith.constant dense<0.000000e+00> : vector<20x2xf32>
    %10 = tpu.matmul %8, %9, %cst_8 {dimension_numbers = #tpu.dot_dimension_numbers<[1], [0], [0], [1], [0, 0, 1, 1], [], []>} : vector<20x100xbf16>, vector<100x2xbf16>, vector<20x2xf32> -> vector<20x2xf32>
    %c0_9 = arith.constant 0 : index
    %c0_10 = arith.constant 0 : index
    %11 = vector.load %arg5[%c0_9, %c0_10] : memref<20x1xf32, #tpu.memory_space<vmem>>, vector<20x1xf32>
    %12 = vector.broadcast %11 : vector<20x1xf32> to vector<20x2xf32>
    %13 = arith.addf %10, %12 : vector<20x2xf32>
    %cst_11 = arith.constant 0.000000e+00 : f32
    %14 = vector.broadcast %cst_11 : f32 to vector<20x2xf32>
    %15 = arith.maximumf %13, %14 : vector<20x2xf32>
    %c0_12 = arith.constant 0 : index
    %c0_13 = arith.constant 0 : index
    %16 = vector.load %arg6[%c0_12, %c0_13] : memref<2x20xbf16, #tpu.memory_space<vmem>>, vector<2x20xbf16>
    %17 = arith.truncf %15 : vector<20x2xf32> to vector<20x2xbf16>
    %cst_14 = arith.constant dense<0.000000e+00> : vector<2x2xf32>
    %18 = tpu.matmul %16, %17, %cst_14 {dimension_numbers = #tpu.dot_dimension_numbers<[1], [0], [0], [1], [0, 0, 1, 1], [], []>} : vector<2x20xbf16>, vector<20x2xbf16>, vector<2x2xf32> -> vector<2x2xf32>
    %c0_15 = arith.constant 0 : index
    %c0_16 = arith.constant 0 : index
    %19 = vector.load %arg7[%c0_15, %c0_16] : memref<2x1xf32, #tpu.memory_space<vmem>>, vector<2x1xf32>
    %20 = vector.broadcast %19 : vector<2x1xf32> to vector<2x2xf32>
    %21 = arith.addf %18, %20 : vector<2x2xf32>
    %c0_17 = arith.constant 0 : index
    %c0_18 = arith.constant 0 : index
    %22 = vector.load %arg8[%c0_17, %c0_18] : memref<2x2xf32, #tpu.memory_space<vmem>>, vector<2x2xf32>
    tpu.vector_store %arg8[%c0_17, %c0_18], %21 {strides = array<i32>} : memref<2x2xf32, #tpu.memory_space<vmem>>, vector<2x2xf32>,
    return
  }
  func.func @transform_0(%arg0: i32) -> (i32, i32) {
    %c0_i32 = arith.constant 0 : i32
    %c0_i32_0 = arith.constant 0 : i32
    return %c0_i32, %arg0 : i32, i32
  }
  func.func @transform_1(%arg0: i32) -> (i32, i32) {
    %c0_i32 = arith.constant 0 : i32
    %c0_i32_0 = arith.constant 0 : i32
    %c0_i32_1 = arith.constant 0 : i32
    return %c0_i32, %c0_i32_0 : i32, i32
  }
  func.func @transform_2(%arg0: i32) -> (i32, i32) {
    %c0_i32 = arith.constant 0 : i32
    %c0_i32_0 = arith.constant 0 : i32
    %c0_i32_1 = arith.constant 0 : i32
    return %c0_i32, %c0_i32_0 : i32, i32
  }
  func.func @transform_3(%arg0: i32) -> (i32, i32) {
    %c0_i32 = arith.constant 0 : i32
    %c0_i32_0 = arith.constant 0 : i32
    %c0_i32_1 = arith.constant 0 : i32
    return %c0_i32, %c0_i32_0 : i32, i32
  }
  func.func @transform_4(%arg0: i32) -> (i32, i32) {
    %c0_i32 = arith.constant 0 : i32
    %c0_i32_0 = arith.constant 0 : i32
    %c0_i32_1 = arith.constant 0 : i32
    return %c0_i32, %c0_i32_0 : i32, i32
  }
  func.func @transform_5(%arg0: i32) -> (i32, i32) {
    %c0_i32 = arith.constant 0 : i32
    %c0_i32_0 = arith.constant 0 : i32
    %c0_i32_1 = arith.constant 0 : i32
    return %c0_i32, %c0_i32_0 : i32, i32
  }
  func.func @transform_6(%arg0: i32) -> (i32, i32) {
    %c0_i32 = arith.constant 0 : i32
    %c0_i32_0 = arith.constant 0 : i32
    %c0_i32_1 = arith.constant 0 : i32
    return %c0_i32, %c0_i32_0 : i32, i32
  }
  func.func @transform_7(%arg0: i32) -> (i32, i32) {
    %c0_i32 = arith.constant 0 : i32
    %c0_i32_0 = arith.constant 0 : i32
    return %c0_i32, %arg0 : i32, i32
  }
}

</mosaic_0001>

<llo_original>
// kernel: binary_classifier_forward.3
$region0: #{binary_classifier_forward.3}
  #allocation0 [shape = 'u32[]', space=smem, size = 0x4, offset = 0x4, fixed_abs, tag = 'smem constant byte address 0x4 - core index']
  #allocation1 [shape = 'u32[72,128]{1,0:T(1,128)}', space=vmem, size = 0x9000, scoped, tag = 'internal scratch']
  %s0 = inlined_call_operand.vmem [shape: bf16[4,75,392], index: 0, kind: input, shape index: {}]
  %s1 = inlined_call_operand.vmem [shape: bf16[6,75], index: 1, kind: input, shape index: {}]
  %s2 = inlined_call_operand.vmem [shape: f32[6,1], index: 2, kind: input, shape index: {}]
  %s3 = inlined_call_operand.vmem [shape: bf16[6,392], index: 3, kind: output, shape index: {}]
  %s4 = sld [smem:[#allocation0]]
  $region22: #{binary_classifier_forward.3} parent=0
    _
  %s6 = ssub.s32 1, %s4
  %s7 = scalar_select 0, %s6, %s4
  // Predicated region
  $region2: #{binary_classifier_forward.3} parent=0 // pred_check
    _
  $region3: #{binary_classifier_forward.3} parent=0 // pred_check_branch
    %9 = sbr.rel (0) target = $region5
  $region4: #{binary_classifier_forward.3} parent=0 // pred_region
    _
  $region5: #{binary_classifier_forward.3} parent=0 // pred_fallthru
    _
  // Predicated region
  $region6: #{binary_classifier_forward.3} parent=0 // pred_check
    _
  $region7: #{binary_classifier_forward.3} parent=0 // pred_check_branch
    %11 = sbr.rel (0) target = $region9
  $region8: #{binary_classifier_forward.3} parent=0 // pred_region
    _
  $region9: #{binary_classifier_forward.3} parent=0 // pred_fallthru
    _
  // Predicated region
  $region10: #{binary_classifier_forward.3} parent=0 // pred_check
    _
  $region11: #{binary_classifier_forward.3} parent=0 // pred_check_branch
    %13 = sbr.rel (0) target = $region13
  $region12: #{binary_classifier_forward.3} parent=0 // pred_region
    _
  $region13: #{binary_classifier_forward.3} parent=0 // pred_fallthru
    _
  %v15 = vld [vmem:[%s1] sm:$0x7]
  %v16 = vld [vmem:[%s0] sm:$0xff]
  %v17 = vld [vmem:[%s0 + $0x8] sm:$0xff]
  %v18 = vld [vmem:[%s0 + $0x10] sm:$0xff]
  %v19 = vld [vmem:[%s0 + $0x18] sm:$0xff]
  %v20 = vld [vmem:[%s0 + $0x20] sm:$0xff]
  %v21 = vld [vmem:[%s0 + $0x28] sm:$0xff]
  %v22 = vld [vmem:[%s0 + $0x30] sm:$0xff]
  %v23 = vld [vmem:[%s0 + $0x38] sm:$0xff]
  %v24 = vld [vmem:[%s0 + $0x40] sm:$0xff]
  %v25 = vld [vmem:[%s0 + $0x48] sm:$0xff]
  %v26 = vld [vmem:[%s0 + $0x50] sm:$0xff]
  %v27 = vld [vmem:[%s0 + $0x58] sm:$0xff]
  %v28 = vld [vmem:[%s0 + $0x60] sm:$0xff]
  %v29 = vld [vmem:[%s0 + $0x68] sm:$0xff]
  %v30 = vld [vmem:[%s0 + $0x70] sm:$0xff]
  %v31 = vld [vmem:[%s0 + $0x78] sm:$0xff]
  %v32 = vld [vmem:[%s0 + $0x80] sm:$0xff]
  %v33 = vld [vmem:[%s0 + $0x88] sm:$0xff]
  %v34 = vld [vmem:[%s0 + $0x90] sm:$0x33]
  %v35 = vld [vmem:[%s0 + $0x98] sm:$0x33]
  %v56 = vunpack.c.l.b16 %v16
  %v57 = vunpack.c.h.b16 %v16
  %v58 = vunpack.c.l.b16 %v17
  %v59 = vunpack.c.h.b16 %v17
  %v60 = vunpack.c.l.b16 %v18
  %v61 = vunpack.c.h.b16 %v18
  %v62 = vunpack.c.l.b16 %v19
  %v63 = vunpack.c.h.b16 %v19
  %v64 = vunpack.c.l.b16 %v20
  %v65 = vunpack.c.h.b16 %v20
  %v66 = vunpack.c.l.b16 %v21
  %v67 = vunpack.c.h.b16 %v21
  %v68 = vunpack.c.l.b16 %v22
  %v69 = vunpack.c.h.b16 %v22
  %v70 = vunpack.c.l.b16 %v23
  %v71 = vunpack.c.h.b16 %v23
  %v72 = vunpack.c.l.b16 %v24
  %v73 = vunpack.c.h.b16 %v24
  %v74 = vunpack.c.l.b16 %v25
  %v75 = vunpack.c.h.b16 %v25
  %v76 = vunpack.c.l.b16 %v26
  %v77 = vunpack.c.h.b16 %v26
  %v78 = vunpack.c.l.b16 %v27
  %v79 = vunpack.c.h.b16 %v27
  %v80 = vunpack.c.l.b16 %v28
  %v81 = vunpack.c.h.b16 %v28
  %v82 = vunpack.c.l.b16 %v29
  %v83 = vunpack.c.h.b16 %v29
  %v84 = vunpack.c.l.b16 %v30
  %v85 = vunpack.c.h.b16 %v30
  %v86 = vunpack.c.l.b16 %v31
  %v87 = vunpack.c.h.b16 %v31
  %v88 = vunpack.c.l.b16 %v32
  %v89 = vunpack.c.h.b16 %v32
  %v90 = vunpack.c.l.b16 %v33
  %v91 = vunpack.c.h.b16 %v33
  %v92 = vunpack.c.l.b16 %v34
  %v93 = vunpack.c.h.b16 %v34
  %v94 = vunpack.c.l.b16 %v35
  %v95 = vunpack.c.h.b16 %v35
  %v96 = vpack.c.b16 %v60, %v56
  %v97 = vpack.c.b16 %v61, %v57
  %v98 = vpack.c.b16 %v62, %v58
  %v99 = vpack.c.b16 %v63, %v59
  %v100 = vpack.c.b16 %v68, %v64
  %v101 = vpack.c.b16 %v69, %v65
  %v102 = vpack.c.b16 %v70, %v66
  %v103 = vpack.c.b16 %v71, %v67
  %v104 = vpack.c.b16 %v76, %v72
  %v105 = vpack.c.b16 %v77, %v73
  %v106 = vpack.c.b16 %v78, %v74
  %v107 = vpack.c.b16 %v79, %v75
  %v108 = vpack.c.b16 %v84, %v80
  %v109 = vpack.c.b16 %v85, %v81
  %v110 = vpack.c.b16 %v86, %v82
  %v111 = vpack.c.b16 %v87, %v83
  %v112 = vpack.c.b16 %v92, %v88
  %v113 = vpack.c.b16 %v93, %v89
  %v114 = vpack.c.b16 %v94, %v90
  %v115 = vpack.c.b16 %v95, %v91
  %vm132 = vcmask 613376
  %v134 = vsel %vm132, %v15, 0
  %vm136 = vcmask 1044480
  %vm137 = vcmask 1045504
  %v138 = vsel %vm136, 4294967295, 65535
  %v139 = vsel %vm137, %v138, 0
  %v141 = vand.u32 %v112, %v139
  %v144 = vand.u32 %v113, %v139
  %v147 = vand.u32 %v114, %v139
  %v150 = vand.u32 %v115, %v139
  %152 = vmatpush.bf16.msra.mxu0 0
  %153 = vmatpush.bf16.msra.mxu0 0
  %154 = vmatpush.bf16.msra.mxu0 0
  %155 = vmatpush.bf16.msra.mxu0 %v141
  %156 = vmatpush.bf16.msra.mxu0 %v108
  %157 = vmatpush.bf16.msra.mxu0 %v104
  %158 = vmatpush.bf16.msra.mxu0 %v100
  %159 = vmatpush.bf16.msra.mxu0 %v96
  %160 = vmatmul.bf16.gmra.mxu0 %v134
  %v161 = vpop.f32.mrf.mxu0
  %v162 = vadd.f32 0.0, %v161
  %v163 = vpop.f32.mrf.mxu0
  %164 = vdwg.mxu0
  %165 = vmatpush.bf16.msra.mxu0 0
  %166 = vmatpush.bf16.msra.mxu0 0
  %167 = vmatpush.bf16.msra.mxu0 0
  %168 = vmatpush.bf16.msra.mxu0 %v144
  %169 = vmatpush.bf16.msra.mxu0 %v109
  %170 = vmatpush.bf16.msra.mxu0 %v105
  %171 = vmatpush.bf16.msra.mxu0 %v101
  %172 = vmatpush.bf16.msra.mxu0 %v97
  %173 = vmatmul.bf16.gmra.mxu0 %v134
  %v174 = vpop.f32.mrf.mxu0
  %v175 = vadd.f32 0.0, %v174
  %v176 = vpop.f32.mrf.mxu0
  %177 = vdwg.mxu0
  %178 = vmatpush.bf16.msra.mxu0 0
  %179 = vmatpush.bf16.msra.mxu0 0
  %180 = vmatpush.bf16.msra.mxu0 0
  %181 = vmatpush.bf16.msra.mxu0 %v147
  %182 = vmatpush.bf16.msra.mxu0 %v110
  %183 = vmatpush.bf16.msra.mxu0 %v106
  %184 = vmatpush.bf16.msra.mxu0 %v102
  %185 = vmatpush.bf16.msra.mxu0 %v98
  %186 = vmatmul.bf16.gmra.mxu0 %v134
  %v187 = vpop.f32.mrf.mxu0
  %v188 = vadd.f32 0.0, %v187
  %v189 = vpop.f32.mrf.mxu0
  %190 = vdwg.mxu0
  %191 = vmatpush.bf16.msra.mxu0 0
  %192 = vmatpush.bf16.msra.mxu0 0
  %193 = vmatpush.bf16.msra.mxu0 0
  %194 = vmatpush.bf16.msra.mxu0 %v150
  %195 = vmatpush.bf16.msra.mxu0 %v111
  %196 = vmatpush.bf16.msra.mxu0 %v107
  %197 = vmatpush.bf16.msra.mxu0 %v103
  %198 = vmatpush.bf16.msra.mxu0 %v99
  %199 = vmatmul.bf16.gmra.mxu0 %v134
  %v200 = vpop.f32.mrf.mxu0
  %v201 = vadd.f32 0.0, %v200
  %v202 = vpop.f32.mrf.mxu0
  %203 = vdwg.mxu0
  %s204 = scalar_lea.vmem %s0, 160
  %v205 = vld [vmem:[%s204] sm:$0xff]
  %v206 = vld [vmem:[%s204 + $0x8] sm:$0xff]
  %v207 = vld [vmem:[%s204 + $0x10] sm:$0xff]
  %v208 = vld [vmem:[%s204 + $0x18] sm:$0xff]
  %v209 = vld [vmem:[%s204 + $0x20] sm:$0xff]
  %v210 = vld [vmem:[%s204 + $0x28] sm:$0xff]
  %v211 = vld [vmem:[%s204 + $0x30] sm:$0xff]
  %v212 = vld [vmem:[%s204 + $0x38] sm:$0xff]
  %v213 = vld [vmem:[%s204 + $0x40] sm:$0xff]
  %v214 = vld [vmem:[%s204 + $0x48] sm:$0xff]
  %v215 = vld [vmem:[%s204 + $0x50] sm:$0xff]
  %v216 = vld [vmem:[%s204 + $0x58] sm:$0xff]
  %v217 = vld [vmem:[%s204 + $0x60] sm:$0xff]
  %v218 = vld [vmem:[%s204 + $0x68] sm:$0xff]
  %v219 = vld [vmem:[%s204 + $0x70] sm:$0xff]
  %v220 = vld [vmem:[%s204 + $0x78] sm:$0xff]
  %v221 = vld [vmem:[%s204 + $0x80] sm:$0xff]
  %v222 = vld [vmem:[%s204 + $0x88] sm:$0xff]
  %v223 = vld [vmem:[%s204 + $0x90] sm:$0x33]
  %v224 = vld [vmem:[%s204 + $0x98] sm:$0x33]
  %v245 = vunpack.c.l.b16 %v205
  %v246 = vunpack.c.h.b16 %v205
  %v247 = vunpack.c.l.b16 %v206
  %v248 = vunpack.c.h.b16 %v206
  %v249 = vunpack.c.l.b16 %v207
  %v250 = vunpack.c.h.b16 %v207
  %v251 = vunpack.c.l.b16 %v208
  %v252 = vunpack.c.h.b16 %v208
  %v253 = vunpack.c.l.b16 %v209
  %v254 = vunpack.c.h.b16 %v209
  %v255 = vunpack.c.l.b16 %v210
  %v256 = vunpack.c.h.b16 %v210
  %v257 = vunpack.c.l.b16 %v211
  %v258 = vunpack.c.h.b16 %v211
  %v259 = vunpack.c.l.b16 %v212
  %v260 = vunpack.c.h.b16 %v212
  %v261 = vunpack.c.l.b16 %v213
  %v262 = vunpack.c.h.b16 %v213
  %v263 = vunpack.c.l.b16 %v214
  %v264 = vunpack.c.h.b16 %v214
  %v265 = vunpack.c.l.b16 %v215
  %v266 = vunpack.c.h.b16 %v215
  %v267 = vunpack.c.l.b16 %v216
  %v268 = vunpack.c.h.b16 %v216
  %v269 = vunpack.c.l.b16 %v217
  %v270 = vunpack.c.h.b16 %v217
  %v271 = vunpack.c.l.b16 %v218
  %v272 = vunpack.c.h.b16 %v218
  %v273 = vunpack.c.l.b16 %v219
  %v274 = vunpack.c.h.b16 %v219
  %v275 = vunpack.c.l.b16 %v220
  %v276 = vunpack.c.h.b16 %v220
  %v277 = vunpack.c.l.b16 %v221
  %v278 = vunpack.c.h.b16 %v221
  %v279 = vunpack.c.l.b16 %v222
  %v280 = vunpack.c.h.b16 %v222
  %v281 = vunpack.c.l.b16 %v223
  %v282 = vunpack.c.h.b16 %v223
  %v283 = vunpack.c.l.b16 %v224
  %v284 = vunpack.c.h.b16 %v224
  %v285 = vpack.c.b16 %v249, %v245
  %v286 = vpack.c.b16 %v250, %v246
  %v287 = vpack.c.b16 %v251, %v247
  %v288 = vpack.c.b16 %v252, %v248
  %v289 = vpack.c.b16 %v257, %v253
  %v290 = vpack.c.b16 %v258, %v254
  %v291 = vpack.c.b16 %v259, %v255
  %v292 = vpack.c.b16 %v260, %v256
  %v293 = vpack.c.b16 %v265, %v261
  %v294 = vpack.c.b16 %v266, %v262
  %v295 = vpack.c.b16 %v267, %v263
  %v296 = vpack.c.b16 %v268, %v264
  %v297 = vpack.c.b16 %v273, %v269
  %v298 = vpack.c.b16 %v274, %v270
  %v299 = vpack.c.b16 %v275, %v271
  %v300 = vpack.c.b16 %v276, %v272
  %v301 = vpack.c.b16 %v281, %v277
  %v302 = vpack.c.b16 %v282, %v278
  %v303 = vpack.c.b16 %v283, %v279
  %v304 = vpack.c.b16 %v284, %v280
  %v322 = vand.u32 %v301, %v139
  %v325 = vand.u32 %v302, %v139
  %v328 = vand.u32 %v303, %v139
  %v331 = vand.u32 %v304, %v139
  %333 = vmatpush.bf16.msra.mxu0 0
  %334 = vmatpush.bf16.msra.mxu0 0
  %335 = vmatpush.bf16.msra.mxu0 0
  %336 = vmatpush.bf16.msra.mxu0 %v322
  %337 = vmatpush.bf16.msra.mxu0 %v297
  %338 = vmatpush.bf16.msra.mxu0 %v293
  %339 = vmatpush.bf16.msra.mxu0 %v289
  %340 = vmatpush.bf16.msra.mxu0 %v285
  %341 = vmatmul.bf16.gmra.mxu0 %v134
  %v342 = vpop.f32.mrf.mxu0
  %v343 = vadd.f32 0.0, %v342
  %v344 = vpop.f32.mrf.mxu0
  %345 = vdwg.mxu0
  %346 = vmatpush.bf16.msra.mxu0 0
  %347 = vmatpush.bf16.msra.mxu0 0
  %348 = vmatpush.bf16.msra.mxu0 0
  %349 = vmatpush.bf16.msra.mxu0 %v325
  %350 = vmatpush.bf16.msra.mxu0 %v298
  %351 = vmatpush.bf16.msra.mxu0 %v294
  %352 = vmatpush.bf16.msra.mxu0 %v290
  %353 = vmatpush.bf16.msra.mxu0 %v286
  %354 = vmatmul.bf16.gmra.mxu0 %v134
  %v355 = vpop.f32.mrf.mxu0
  %v356 = vadd.f32 0.0, %v355
  %v357 = vpop.f32.mrf.mxu0
  %358 = vdwg.mxu0
  %359 = vmatpush.bf16.msra.mxu0 0
  %360 = vmatpush.bf16.msra.mxu0 0
  %361 = vmatpush.bf16.msra.mxu0 0
  %362 = vmatpush.bf16.msra.mxu0 %v328
  %363 = vmatpush.bf16.msra.mxu0 %v299
  %364 = vmatpush.bf16.msra.mxu0 %v295
  %365 = vmatpush.bf16.msra.mxu0 %v291
  %366 = vmatpush.bf16.msra.mxu0 %v287
  %367 = vmatmul.bf16.gmra.mxu0 %v134
  %v368 = vpop.f32.mrf.mxu0
  %v369 = vadd.f32 0.0, %v368
  %v370 = vpop.f32.mrf.mxu0
  %371 = vdwg.mxu0
  %372 = vmatpush.bf16.msra.mxu0 0
  %373 = vmatpush.bf16.msra.mxu0 0
  %374 = vmatpush.bf16.msra.mxu0 0
  %375 = vmatpush.bf16.msra.mxu0 %v331
  %376 = vmatpush.bf16.msra.mxu0 %v300
  %377 = vmatpush.bf16.msra.mxu0 %v296
  %378 = vmatpush.bf16.msra.mxu0 %v292
  %379 = vmatpush.bf16.msra.mxu0 %v288
  %380 = vmatmul.bf16.gmra.mxu0 %v134
  %v381 = vpop.f32.mrf.mxu0
  %v382 = vadd.f32 0.0, %v381
  %v383 = vpop.f32.mrf.mxu0
  %384 = vdwg.mxu0
  %v385 = vmax.f32 %v162, %v343
  %v386 = vmax.f32 %v175, %v356
  %v387 = vmax.f32 %v188, %v369
  %v388 = vmax.f32 %v201, %v382
  %s389 = scalar_lea.vmem %s0, 320
  %v390 = vld [vmem:[%s389] sm:$0xff]
  %v391 = vld [vmem:[%s389 + $0x8] sm:$0xff]
  %v392 = vld [vmem:[%s389 + $0x10] sm:$0xff]
  %v393 = vld [vmem:[%s389 + $0x18] sm:$0xff]
  %v394 = vld [vmem:[%s389 + $0x20] sm:$0xff]
  %v395 = vld [vmem:[%s389 + $0x28] sm:$0xff]
  %v396 = vld [vmem:[%s389 + $0x30] sm:$0xff]
  %v397 = vld [vmem:[%s389 + $0x38] sm:$0xff]
  %v398 = vld [vmem:[%s389 + $0x40] sm:$0xff]
  %v399 = vld [vmem:[%s389 + $0x48] sm:$0xff]
  %v400 = vld [vmem:[%s389 + $0x50] sm:$0xff]
  %v401 = vld [vmem:[%s389 + $0x58] sm:$0xff]
  %v402 = vld [vmem:[%s389 + $0x60] sm:$0xff]
  %v403 = vld [vmem:[%s389 + $0x68] sm:$0xff]
  %v404 = vld [vmem:[%s389 + $0x70] sm:$0xff]
  %v405 = vld [vmem:[%s389 + $0x78] sm:$0xff]
  %v406 = vld [vmem:[%s389 + $0x80] sm:$0xff]
  %v407 = vld [vmem:[%s389 + $0x88] sm:$0xff]
  %v408 = vld [vmem:[%s389 + $0x90] sm:$0x33]
  %v409 = vld [vmem:[%s389 + $0x98] sm:$0x33]
  %v430 = vunpack.c.l.b16 %v390
  %v431 = vunpack.c.h.b16 %v390
  %v432 = vunpack.c.l.b16 %v391
  %v433 = vunpack.c.h.b16 %v391
  %v434 = vunpack.c.l.b16 %v392
  %v435 = vunpack.c.h.b16 %v392
  %v436 = vunpack.c.l.b16 %v393
  %v437 = vunpack.c.h.b16 %v393
  %v438 = vunpack.c.l.b16 %v394
  %v439 = vunpack.c.h.b16 %v394
  %v440 = vunpack.c.l.b16 %v395
  %v441 = vunpack.c.h.b16 %v395
  %v442 = vunpack.c.l.b16 %v396
  %v443 = vunpack.c.h.b16 %v396
  %v444 = vunpack.c.l.b16 %v397
  %v445 = vunpack.c.h.b16 %v397
  %v446 = vunpack.c.l.b16 %v398
  %v447 = vunpack.c.h.b16 %v398
  %v448 = vunpack.c.l.b16 %v399
  %v449 = vunpack.c.h.b16 %v399
  %v450 = vunpack.c.l.b16 %v400
  %v451 = vunpack.c.h.b16 %v400
  %v452 = vunpack.c.l.b16 %v401
  %v453 = vunpack.c.h.b16 %v401
  %v454 = vunpack.c.l.b16 %v402
  %v455 = vunpack.c.h.b16 %v402
  %v456 = vunpack.c.l.b16 %v403
  %v457 = vunpack.c.h.b16 %v403
  %v458 = vunpack.c.l.b16 %v404
  %v459 = vunpack.c.h.b16 %v404
  %v460 = vunpack.c.l.b16 %v405
  %v461 = vunpack.c.h.b16 %v405
  %v462 = vunpack.c.l.b16 %v406
  %v463 = vunpack.c.h.b16 %v406
  %v464 = vunpack.c.l.b16 %v407
  %v465 = vunpack.c.h.b16 %v407
  %v466 = vunpack.c.l.b16 %v408
  %v467 = vunpack.c.h.b16 %v408
  %v468 = vunpack.c.l.b16 %v409
  %v469 = vunpack.c.h.b16 %v409
  %v470 = vpack.c.b16 %v434, %v430
  %v471 = vpack.c.b16 %v435, %v431
  %v472 = vpack.c.b16 %v436, %v432
  %v473 = vpack.c.b16 %v437, %v433
  %v474 = vpack.c.b16 %v442, %v438
  %v475 = vpack.c.b16 %v443, %v439
  %v476 = vpack.c.b16 %v444, %v440
  %v477 = vpack.c.b16 %v445, %v441
  %v478 = vpack.c.b16 %v450, %v446
  %v479 = vpack.c.b16 %v451, %v447
  %v480 = vpack.c.b16 %v452, %v448
  %v481 = vpack.c.b16 %v453, %v449
  %v482 = vpack.c.b16 %v458, %v454
  %v483 = vpack.c.b16 %v459, %v455
  %v484 = vpack.c.b16 %v460, %v456
  %v485 = vpack.c.b16 %v461, %v457
  %v486 = vpack.c.b16 %v466, %v462
  %v487 = vpack.c.b16 %v467, %v463
  %v488 = vpack.c.b16 %v468, %v464
  %v489 = vpack.c.b16 %v469, %v465
  %v507 = vand.u32 %v486, %v139
  %v510 = vand.u32 %v487, %v139
  %v513 = vand.u32 %v488, %v139
  %v516 = vand.u32 %v489, %v139
  %518 = vmatpush.bf16.msra.mxu0 0
  %519 = vmatpush.bf16.msra.mxu0 0
  %520 = vmatpush.bf16.msra.mxu0 0
  %521 = vmatpush.bf16.msra.mxu0 %v507
  %522 = vmatpush.bf16.msra.mxu0 %v482
  %523 = vmatpush.bf16.msra.mxu0 %v478
  %524 = vmatpush.bf16.msra.mxu0 %v474
  %525 = vmatpush.bf16.msra.mxu0 %v470
  %526 = vmatmul.bf16.gmra.mxu0 %v134
  %v527 = vpop.f32.mrf.mxu0
  %v528 = vadd.f32 0.0, %v527
  %v529 = vpop.f32.mrf.mxu0
  %530 = vdwg.mxu0
  %531 = vmatpush.bf16.msra.mxu0 0
  %532 = vmatpush.bf16.msra.mxu0 0
  %533 = vmatpush.bf16.msra.mxu0 0
  %534 = vmatpush.bf16.msra.mxu0 %v510
  %535 = vmatpush.bf16.msra.mxu0 %v483
  %536 = vmatpush.bf16.msra.mxu0 %v479
  %537 = vmatpush.bf16.msra.mxu0 %v475
  %538 = vmatpush.bf16.msra.mxu0 %v471
  %539 = vmatmul.bf16.gmra.mxu0 %v134
  %v540 = vpop.f32.mrf.mxu0
  %v541 = vadd.f32 0.0, %v540
  %v542 = vpop.f32.mrf.mxu0
  %543 = vdwg.mxu0
  %544 = vmatpush.bf16.msra.mxu0 0
  %545 = vmatpush.bf16.msra.mxu0 0
  %546 = vmatpush.bf16.msra.mxu0 0
  %547 = vmatpush.bf16.msra.mxu0 %v513
  %548 = vmatpush.bf16.msra.mxu0 %v484
  %549 = vmatpush.bf16.msra.mxu0 %v480
  %550 = vmatpush.bf16.msra.mxu0 %v476
  %551 = vmatpush.bf16.msra.mxu0 %v472
  %552 = vmatmul.bf16.gmra.mxu0 %v134
  %v553 = vpop.f32.mrf.mxu0
  %v554 = vadd.f32 0.0, %v553
  %v555 = vpop.f32.mrf.mxu0
  %556 = vdwg.mxu0
  %557 = vmatpush.bf16.msra.mxu0 0
  %558 = vmatpush.bf16.msra.mxu0 0
  %559 = vmatpush.bf16.msra.mxu0 0
  %560 = vmatpush.bf16.msra.mxu0 %v516
  %561 = vmatpush.bf16.msra.mxu0 %v485
  %562 = vmatpush.bf16.msra.mxu0 %v481
  %563 = vmatpush.bf16.msra.mxu0 %v477
  %564 = vmatpush.bf16.msra.mxu0 %v473
  %565 = vmatmul.bf16.gmra.mxu0 %v134
  %v566 = vpop.f32.mrf.mxu0
  %v567 = vadd.f32 0.0, %v566
  %v568 = vpop.f32.mrf.mxu0
  %569 = vdwg.mxu0
  %v570 = vmax.f32 %v385, %v528
  %v571 = vmax.f32 %v386, %v541
  %v572 = vmax.f32 %v387, %v554
  %v573 = vmax.f32 %v388, %v567
  %s574 = scalar_lea.vmem %s0, 480
  %v575 = vld [vmem:[%s574] sm:$0xff]
  %v576 = vld [vmem:[%s574 + $0x8] sm:$0xff]
  %v577 = vld [vmem:[%s574 + $0x10] sm:$0xff]
  %v578 = vld [vmem:[%s574 + $0x18] sm:$0xff]
  %v579 = vld [vmem:[%s574 + $0x20] sm:$0xff]
  %v580 = vld [vmem:[%s574 + $0x28] sm:$0xff]
  %v581 = vld [vmem:[%s574 + $0x30] sm:$0xff]
  %v582 = vld [vmem:[%s574 + $0x38] sm:$0xff]
  %v583 = vld [vmem:[%s574 + $0x40] sm:$0xff]
  %v584 = vld [vmem:[%s574 + $0x48] sm:$0xff]
  %v585 = vld [vmem:[%s574 + $0x50] sm:$0xff]
  %v586 = vld [vmem:[%s574 + $0x58] sm:$0xff]
  %v587 = vld [vmem:[%s574 + $0x60] sm:$0xff]
  %v588 = vld [vmem:[%s574 + $0x68] sm:$0xff]
  %v589 = vld [vmem:[%s574 + $0x70] sm:$0xff]
  %v590 = vld [vmem:[%s574 + $0x78] sm:$0xff]
  %v591 = vld [vmem:[%s574 + $0x80] sm:$0xff]
  %v592 = vld [vmem:[%s574 + $0x88] sm:$0xff]
  %v593 = vld [vmem:[%s574 + $0x90] sm:$0x33]
  %v594 = vld [vmem:[%s574 + $0x98] sm:$0x33]
  %v615 = vunpack.c.l.b16 %v575
  %v616 = vunpack.c.h.b16 %v575
  %v617 = vunpack.c.l.b16 %v576
  %v618 = vunpack.c.h.b16 %v576
  %v619 = vunpack.c.l.b16 %v577
  %v620 = vunpack.c.h.b16 %v577
  %v621 = vunpack.c.l.b16 %v578
  %v622 = vunpack.c.h.b16 %v578
  %v623 = vunpack.c.l.b16 %v579
  %v624 = vunpack.c.h.b16 %v579
  %v625 = vunpack.c.l.b16 %v580
  %v626 = vunpack.c.h.b16 %v580
  %v627 = vunpack.c.l.b16 %v581
  %v628 = vunpack.c.h.b16 %v581
  %v629 = vunpack.c.l.b16 %v582
  %v630 = vunpack.c.h.b16 %v582
  %v631 = vunpack.c.l.b16 %v583
  %v632 = vunpack.c.h.b16 %v583
  %v633 = vunpack.c.l.b16 %v584
  %v634 = vunpack.c.h.b16 %v584
  %v635 = vunpack.c.l.b16 %v585
  %v636 = vunpack.c.h.b16 %v585
  %v637 = vunpack.c.l.b16 %v586
  %v638 = vunpack.c.h.b16 %v586
  %v639 = vunpack.c.l.b16 %v587
  %v640 = vunpack.c.h.b16 %v587
  %v641 = vunpack.c.l.b16 %v588
  %v642 = vunpack.c.h.b16 %v588
  %v643 = vunpack.c.l.b16 %v589
  %v644 = vunpack.c.h.b16 %v589
  %v645 = vunpack.c.l.b16 %v590
  %v646 = vunpack.c.h.b16 %v590
  %v647 = vunpack.c.l.b16 %v591
  %v648 = vunpack.c.h.b16 %v591
  %v649 = vunpack.c.l.b16 %v592
  %v650 = vunpack.c.h.b16 %v592
  %v651 = vunpack.c.l.b16 %v593
  %v652 = vunpack.c.h.b16 %v593
  %v653 = vunpack.c.l.b16 %v594
  %v654 = vunpack.c.h.b16 %v594
  %v655 = vpack.c.b16 %v619, %v615
  %v656 = vpack.c.b16 %v620, %v616
  %v657 = vpack.c.b16 %v621, %v617
  %v658 = vpack.c.b16 %v622, %v618
  %v659 = vpack.c.b16 %v627, %v623
  %v660 = vpack.c.b16 %v628, %v624
  %v661 = vpack.c.b16 %v629, %v625
  %v662 = vpack.c.b16 %v630, %v626
  %v663 = vpack.c.b16 %v635, %v631
  %v664 = vpack.c.b16 %v636, %v632
  %v665 = vpack.c.b16 %v637, %v633
  %v666 = vpack.c.b16 %v638, %v634
  %v667 = vpack.c.b16 %v643, %v639
  %v668 = vpack.c.b16 %v644, %v640
  %v669 = vpack.c.b16 %v645, %v641
  %v670 = vpack.c.b16 %v646, %v642
  %v671 = vpack.c.b16 %v651, %v647
  %v672 = vpack.c.b16 %v652, %v648
  %v673 = vpack.c.b16 %v653, %v649
  %v674 = vpack.c.b16 %v654, %v650
  %v692 = vand.u32 %v671, %v139
  %v695 = vand.u32 %v672, %v139
  %v698 = vand.u32 %v673, %v139
  %v701 = vand.u32 %v674, %v139
  %703 = vmatpush.bf16.msra.mxu0 0
  %704 = vmatpush.bf16.msra.mxu0 0
  %705 = vmatpush.bf16.msra.mxu0 0
  %706 = vmatpush.bf16.msra.mxu0 %v692
  %707 = vmatpush.bf16.msra.mxu0 %v667
  %708 = vmatpush.bf16.msra.mxu0 %v663
  %709 = vmatpush.bf16.msra.mxu0 %v659
  %710 = vmatpush.bf16.msra.mxu0 %v655
  %711 = vmatmul.bf16.gmra.mxu0 %v134
  %v712 = vpop.f32.mrf.mxu0
  %v713 = vadd.f32 0.0, %v712
  %v714 = vpop.f32.mrf.mxu0
  %715 = vdwg.mxu0
  %716 = vmatpush.bf16.msra.mxu0 0
  %717 = vmatpush.bf16.msra.mxu0 0
  %718 = vmatpush.bf16.msra.mxu0 0
  %719 = vmatpush.bf16.msra.mxu0 %v695
  %720 = vmatpush.bf16.msra.mxu0 %v668
  %721 = vmatpush.bf16.msra.mxu0 %v664
  %722 = vmatpush.bf16.msra.mxu0 %v660
  %723 = vmatpush.bf16.msra.mxu0 %v656
  %724 = vmatmul.bf16.gmra.mxu0 %v134
  %v725 = vpop.f32.mrf.mxu0
  %v726 = vadd.f32 0.0, %v725
  %v727 = vpop.f32.mrf.mxu0
  %728 = vdwg.mxu0
  %729 = vmatpush.bf16.msra.mxu0 0
  %730 = vmatpush.bf16.msra.mxu0 0
  %731 = vmatpush.bf16.msra.mxu0 0
  %732 = vmatpush.bf16.msra.mxu0 %v698
  %733 = vmatpush.bf16.msra.mxu0 %v669
  %734 = vmatpush.bf16.msra.mxu0 %v665
  %735 = vmatpush.bf16.msra.mxu0 %v661
  %736 = vmatpush.bf16.msra.mxu0 %v657
  %737 = vmatmul.bf16.gmra.mxu0 %v134
  %v738 = vpop.f32.mrf.mxu0
  %v739 = vadd.f32 0.0, %v738
  %v740 = vpop.f32.mrf.mxu0
  %741 = vdwg.mxu0
  %742 = vmatpush.bf16.msra.mxu0 0
  %743 = vmatpush.bf16.msra.mxu0 0
  %744 = vmatpush.bf16.msra.mxu0 0
  %745 = vmatpush.bf16.msra.mxu0 %v701
  %746 = vmatpush.bf16.msra.mxu0 %v670
  %747 = vmatpush.bf16.msra.mxu0 %v666
  %748 = vmatpush.bf16.msra.mxu0 %v662
  %749 = vmatpush.bf16.msra.mxu0 %v658
  %750 = vmatmul.bf16.gmra.mxu0 %v134
  %v751 = vpop.f32.mrf.mxu0
  %v752 = vadd.f32 0.0, %v751
  %v753 = vpop.f32.mrf.mxu0
  %754 = vdwg.mxu0
  %v755 = vmax.f32 %v570, %v713
  %v756 = vmax.f32 %v571, %v726
  %v757 = vmax.f32 %v572, %v739
  %v758 = vmax.f32 %v573, %v752
  %v759 = vld [vmem:[%s2] sm:$0x3f]
  %761 = vset.pattern.permute.xlu0 0
  %762 = vperm.xlu0 %761, %v759
  %v763 = vpop.permute.xlu0 %762
  %v765 = vadd.f32 %v755, %v763
  %v766 = vadd.f32 %v756, %v763
  %v767 = vadd.f32 %v757, %v763
  %v768 = vadd.f32 %v758, %v763
  %v769 = vmax.f32 %v765, 0.0
  %v770 = vmax.f32 %v766, 0.0
  %v771 = vmax.f32 %v767, 0.0
  %v772 = vmax.f32 %v768, 0.0
  %v773 = vpack.c.bf16 %v770, %v769
  %v774 = vpack.c.bf16 %v772, %v771
  %775 = vst [vmem:[%s3] sm:$0x77] %v773
  %vm776 = vcmask 1042432
  %vm777 = vcmask 63492
  %vm778 = vmor %vm777, %vm776
  %779 = vst.msk [vmem:[%s3 + $0x8] sm:$0x77] %vm778, %v774
  // Predicated region
  $region14: #{binary_classifier_forward.3} parent=0 // pred_check
    _
  $region15: #{binary_classifier_forward.3} parent=0 // pred_check_branch
    %781 = sbr.rel (0) target = $region17
  $region16: #{binary_classifier_forward.3} parent=0 // pred_region
    _
  $region17: #{binary_classifier_forward.3} parent=0 // pred_fallthru
    _
  // Predicated region
  $region18: #{binary_classifier_forward.3} parent=0 // pred_check
    _
  $region19: #{binary_classifier_forward.3} parent=0 // pred_check_branch
    %783 = sbr.rel (0) target = $region21
  $region20: #{binary_classifier_forward.3} parent=0 // pred_region
    _
  $region21: #{binary_classifier_forward.3} parent=0 // pred_fallthru
    _

// kernel: binary_classifier_forward.4
$region0: #{binary_classifier_forward.4}
  #allocation0 [shape = 'u32[]', space=smem, size = 0x4, offset = 0x4, fixed_abs, tag = 'smem constant byte address 0x4 - core index']
  #allocation1 [shape = 'u32[72,128]{1,0:T(1,128)}', space=vmem, size = 0x9000, scoped, tag = 'internal scratch']
  %s0 = inlined_call_operand.vmem [shape: bf16[4,150,50], index: 0, kind: input, shape index: {}]
  %s1 = inlined_call_operand.vmem [shape: bf16[16,150], index: 1, kind: input, shape index: {}]
  %s2 = inlined_call_operand.vmem [shape: f32[16,1], index: 2, kind: input, shape index: {}]
  %s3 = inlined_call_operand.vmem [shape: bf16[16,50], index: 3, kind: output, shape index: {}]
  %s4 = sld [smem:[#allocation0]]
  $region22: #{binary_classifier_forward.4} parent=0
    _
  %s6 = ssub.s32 1, %s4
  %s7 = scalar_select 0, %s6, %s4
  // Predicated region
  $region2: #{binary_classifier_forward.4} parent=0 // pred_check
    _
  $region3: #{binary_classifier_forward.4} parent=0 // pred_check_branch
    %9 = sbr.rel (0) target = $region5
  $region4: #{binary_classifier_forward.4} parent=0 // pred_region
    _
  $region5: #{binary_classifier_forward.4} parent=0 // pred_fallthru
    _
  // Predicated region
  $region6: #{binary_classifier_forward.4} parent=0 // pred_check
    _
  $region7: #{binary_classifier_forward.4} parent=0 // pred_check_branch
    %11 = sbr.rel (0) target = $region9
  $region8: #{binary_classifier_forward.4} parent=0 // pred_region
    _
  $region9: #{binary_classifier_forward.4} parent=0 // pred_fallthru
    _
  // Predicated region
  $region10: #{binary_classifier_forward.4} parent=0 // pred_check
    _
  $region11: #{binary_classifier_forward.4} parent=0 // pred_check_branch
    %13 = sbr.rel (0) target = $region13
  $region12: #{binary_classifier_forward.4} parent=0 // pred_region
    _
  $region13: #{binary_classifier_forward.4} parent=0 // pred_fallthru
    _
  %v15 = vld [vmem:[%s1] sm:$0xff]
  %v16 = vld [vmem:[%s1 + $0x8] sm:$0xff]
  %v17 = vld [vmem:[%s0] sm:$0xf]
  %v18 = vld [vmem:[%s0 + $0x4] sm:$0xf]
  %v19 = vld [vmem:[%s0 + $0x8] sm:$0xf]
  %v20 = vld [vmem:[%s0 + $0xc] sm:$0xf]
  %v21 = vld [vmem:[%s0 + $0x10] sm:$0xf]
  %v22 = vld [vmem:[%s0 + $0x14] sm:$0xf]
  %v23 = vld [vmem:[%s0 + $0x18] sm:$0xf]
  %v24 = vld [vmem:[%s0 + $0x1c] sm:$0xf]
  %v25 = vld [vmem:[%s0 + $0x20] sm:$0xf]
  %v26 = vld [vmem:[%s0 + $0x24] sm:$0xf]
  %v27 = vld [vmem:[%s0 + $0x28] sm:$0xf]
  %v28 = vld [vmem:[%s0 + $0x2c] sm:$0xf]
  %v29 = vld [vmem:[%s0 + $0x30] sm:$0xf]
  %v30 = vld [vmem:[%s0 + $0x34] sm:$0xf]
  %v31 = vld [vmem:[%s0 + $0x38] sm:$0xf]
  %v32 = vld [vmem:[%s0 + $0x3c] sm:$0xf]
  %v33 = vld [vmem:[%s0 + $0x40] sm:$0xf]
  %v34 = vld [vmem:[%s0 + $0x44] sm:$0xf]
  %v35 = vld [vmem:[%s0 + $0x48] sm:$0x7]
  %v38 = vunpack.c.l.b16 %v15
  %v39 = vunpack.c.h.b16 %v15
  %v40 = vunpack.c.l.b16 %v16
  %v41 = vunpack.c.h.b16 %v16
  %v42 = vpack.c.b16 %v40, %v38
  %v43 = vpack.c.b16 %v41, %v39
  %v64 = vunpack.c.l.b16 %v17
  %v65 = vunpack.c.l.b16 %v18
  %v66 = vunpack.c.l.b16 %v19
  %v67 = vunpack.c.l.b16 %v20
  %v68 = vunpack.c.l.b16 %v21
  %v69 = vunpack.c.l.b16 %v22
  %v70 = vunpack.c.l.b16 %v23
  %v71 = vunpack.c.l.b16 %v24
  %v72 = vunpack.c.l.b16 %v25
  %v73 = vunpack.c.l.b16 %v26
  %v74 = vunpack.c.l.b16 %v27
  %v75 = vunpack.c.l.b16 %v28
  %v76 = vunpack.c.l.b16 %v29
  %v77 = vunpack.c.l.b16 %v30
  %v78 = vunpack.c.l.b16 %v31
  %v79 = vunpack.c.l.b16 %v32
  %v80 = vunpack.c.l.b16 %v33
  %v81 = vunpack.c.l.b16 %v34
  %v82 = vunpack.c.l.b16 %v35
  %v83 = vpack.c.b16 %v65, %v64
  %v84 = vpack.c.b16 %v67, %v66
  %v85 = vpack.c.b16 %v69, %v68
  %v86 = vpack.c.b16 %v71, %v70
  %v87 = vpack.c.b16 %v73, %v72
  %v88 = vpack.c.b16 %v75, %v74
  %v89 = vpack.c.b16 %v77, %v76
  %v90 = vpack.c.b16 %v79, %v78
  %v91 = vpack.c.b16 %v81, %v80
  %v92 = vpack.c.b16 %v82, %v82
  %vm102 = vcmask 179200
  %v104 = vsel %vm102, %v43, 0
  %vm106 = vcmask 1042432
  %v108 = vsel %vm106, %v92, 0
  %110 = vmatpush.bf16.msra.mxu0 %v90
  %111 = vmatpush.bf16.msra.mxu0 %v89
  %112 = vmatpush.bf16.msra.mxu0 %v88
  %113 = vmatpush.bf16.msra.mxu0 %v87
  %114 = vmatpush.bf16.msra.mxu0 %v86
  %115 = vmatpush.bf16.msra.mxu0 %v85
  %116 = vmatpush.bf16.msra.mxu0 %v84
  %117 = vmatpush.bf16.msra.mxu0 %v83
  %118 = vmatmul.bf16.gmra.mxu0 %v42
  %v119 = vpop.f32.mrf.mxu0
  %v120 = vadd.f32 0.0, %v119
  %v121 = vpop.f32.mrf.mxu0
  %v122 = vadd.f32 0.0, %v121
  %123 = vdwg.mxu0
  %124 = vmatpush.bf16.msra.mxu0 0
  %125 = vmatpush.bf16.msra.mxu0 0
  %126 = vmatpush.bf16.msra.mxu0 0
  %127 = vmatpush.bf16.msra.mxu0 0
  %128 = vmatpush.bf16.msra.mxu0 0
  %129 = vmatpush.bf16.msra.mxu0 0
  %130 = vmatpush.bf16.msra.mxu0 %v108
  %131 = vmatpush.bf16.msra.mxu0 %v91
  %132 = vmatmul.bf16.gmra.mxu0 %v104
  %v133 = vpop.f32.mrf.mxu0
  %v134 = vadd.f32 %v120, %v133
  %v135 = vpop.f32.mrf.mxu0
  %v136 = vadd.f32 %v122, %v135
  %137 = vdwg.mxu0
  %s138 = scalar_lea.vmem %s0, 76
  %v139 = vld [vmem:[%s138] sm:$0xf]
  %v140 = vld [vmem:[%s138 + $0x4] sm:$0xf]
  %v141 = vld [vmem:[%s138 + $0x8] sm:$0xf]
  %v142 = vld [vmem:[%s138 + $0xc] sm:$0xf]
  %v143 = vld [vmem:[%s138 + $0x10] sm:$0xf]
  %v144 = vld [vmem:[%s138 + $0x14] sm:$0xf]
  %v145 = vld [vmem:[%s138 + $0x18] sm:$0xf]
  %v146 = vld [vmem:[%s138 + $0x1c] sm:$0xf]
  %v147 = vld [vmem:[%s138 + $0x20] sm:$0xf]
  %v148 = vld [vmem:[%s138 + $0x24] sm:$0xf]
  %v149 = vld [vmem:[%s138 + $0x28] sm:$0xf]
  %v150 = vld [vmem:[%s138 + $0x2c] sm:$0xf]
  %v151 = vld [vmem:[%s138 + $0x30] sm:$0xf]
  %v152 = vld [vmem:[%s138 + $0x34] sm:$0xf]
  %v153 = vld [vmem:[%s138 + $0x38] sm:$0xf]
  %v154 = vld [vmem:[%s138 + $0x3c] sm:$0xf]
  %v155 = vld [vmem:[%s138 + $0x40] sm:$0xf]
  %v156 = vld [vmem:[%s138 + $0x44] sm:$0xf]
  %v157 = vld [vmem:[%s138 + $0x48] sm:$0x7]
  %v177 = vunpack.c.l.b16 %v139
  %v178 = vunpack.c.l.b16 %v140
  %v179 = vunpack.c.l.b16 %v141
  %v180 = vunpack.c.l.b16 %v142
  %v181 = vunpack.c.l.b16 %v143
  %v182 = vunpack.c.l.b16 %v144
  %v183 = vunpack.c.l.b16 %v145
  %v184 = vunpack.c.l.b16 %v146
  %v185 = vunpack.c.l.b16 %v147
  %v186 = vunpack.c.l.b16 %v148
  %v187 = vunpack.c.l.b16 %v149
  %v188 = vunpack.c.l.b16 %v150
  %v189 = vunpack.c.l.b16 %v151
  %v190 = vunpack.c.l.b16 %v152
  %v191 = vunpack.c.l.b16 %v153
  %v192 = vunpack.c.l.b16 %v154
  %v193 = vunpack.c.l.b16 %v155
  %v194 = vunpack.c.l.b16 %v156
  %v195 = vunpack.c.l.b16 %v157
  %v196 = vpack.c.b16 %v178, %v177
  %v197 = vpack.c.b16 %v180, %v179
  %v198 = vpack.c.b16 %v182, %v181
  %v199 = vpack.c.b16 %v184, %v183
  %v200 = vpack.c.b16 %v186, %v185
  %v201 = vpack.c.b16 %v188, %v187
  %v202 = vpack.c.b16 %v190, %v189
  %v203 = vpack.c.b16 %v192, %v191
  %v204 = vpack.c.b16 %v194, %v193
  %v205 = vpack.c.b16 %v195, %v195
  %v216 = vsel %vm106, %v205, 0
  %218 = vmatpush.bf16.msra.mxu0 %v203
  %219 = vmatpush.bf16.msra.mxu0 %v202
  %220 = vmatpush.bf16.msra.mxu0 %v201
  %221 = vmatpush.bf16.msra.mxu0 %v200
  %222 = vmatpush.bf16.msra.mxu0 %v199
  %223 = vmatpush.bf16.msra.mxu0 %v198
  %224 = vmatpush.bf16.msra.mxu0 %v197
  %225 = vmatpush.bf16.msra.mxu0 %v196
  %226 = vmatmul.bf16.gmra.mxu0 %v42
  %v227 = vpop.f32.mrf.mxu0
  %v228 = vadd.f32 0.0, %v227
  %v229 = vpop.f32.mrf.mxu0
  %v230 = vadd.f32 0.0, %v229
  %231 = vdwg.mxu0
  %232 = vmatpush.bf16.msra.mxu0 0
  %233 = vmatpush.bf16.msra.mxu0 0
  %234 = vmatpush.bf16.msra.mxu0 0
  %235 = vmatpush.bf16.msra.mxu0 0
  %236 = vmatpush.bf16.msra.mxu0 0
  %237 = vmatpush.bf16.msra.mxu0 0
  %238 = vmatpush.bf16.msra.mxu0 %v216
  %239 = vmatpush.bf16.msra.mxu0 %v204
  %240 = vmatmul.bf16.gmra.mxu0 %v104
  %v241 = vpop.f32.mrf.mxu0
  %v242 = vadd.f32 %v228, %v241
  %v243 = vpop.f32.mrf.mxu0
  %v244 = vadd.f32 %v230, %v243
  %245 = vdwg.mxu0
  %v246 = vmax.f32 %v134, %v242
  %v247 = vmax.f32 %v136, %v244
  %s248 = scalar_lea.vmem %s0, 152
  %v249 = vld [vmem:[%s248] sm:$0xf]
  %v250 = vld [vmem:[%s248 + $0x4] sm:$0xf]
  %v251 = vld [vmem:[%s248 + $0x8] sm:$0xf]
  %v252 = vld [vmem:[%s248 + $0xc] sm:$0xf]
  %v253 = vld [vmem:[%s248 + $0x10] sm:$0xf]
  %v254 = vld [vmem:[%s248 + $0x14] sm:$0xf]
  %v255 = vld [vmem:[%s248 + $0x18] sm:$0xf]
  %v256 = vld [vmem:[%s248 + $0x1c] sm:$0xf]
  %v257 = vld [vmem:[%s248 + $0x20] sm:$0xf]
  %v258 = vld [vmem:[%s248 + $0x24] sm:$0xf]
  %v259 = vld [vmem:[%s248 + $0x28] sm:$0xf]
  %v260 = vld [vmem:[%s248 + $0x2c] sm:$0xf]
  %v261 = vld [vmem:[%s248 + $0x30] sm:$0xf]
  %v262 = vld [vmem:[%s248 + $0x34] sm:$0xf]
  %v263 = vld [vmem:[%s248 + $0x38] sm:$0xf]
  %v264 = vld [vmem:[%s248 + $0x3c] sm:$0xf]
  %v265 = vld [vmem:[%s248 + $0x40] sm:$0xf]
  %v266 = vld [vmem:[%s248 + $0x44] sm:$0xf]
  %v267 = vld [vmem:[%s248 + $0x48] sm:$0x7]
  %v287 = vunpack.c.l.b16 %v249
  %v288 = vunpack.c.l.b16 %v250
  %v289 = vunpack.c.l.b16 %v251
  %v290 = vunpack.c.l.b16 %v252
  %v291 = vunpack.c.l.b16 %v253
  %v292 = vunpack.c.l.b16 %v254
  %v293 = vunpack.c.l.b16 %v255
  %v294 = vunpack.c.l.b16 %v256
  %v295 = vunpack.c.l.b16 %v257
  %v296 = vunpack.c.l.b16 %v258
  %v297 = vunpack.c.l.b16 %v259
  %v298 = vunpack.c.l.b16 %v260
  %v299 = vunpack.c.l.b16 %v261
  %v300 = vunpack.c.l.b16 %v262
  %v301 = vunpack.c.l.b16 %v263
  %v302 = vunpack.c.l.b16 %v264
  %v303 = vunpack.c.l.b16 %v265
  %v304 = vunpack.c.l.b16 %v266
  %v305 = vunpack.c.l.b16 %v267
  %v306 = vpack.c.b16 %v288, %v287
  %v307 = vpack.c.b16 %v290, %v289
  %v308 = vpack.c.b16 %v292, %v291
  %v309 = vpack.c.b16 %v294, %v293
  %v310 = vpack.c.b16 %v296, %v295
  %v311 = vpack.c.b16 %v298, %v297
  %v312 = vpack.c.b16 %v300, %v299
  %v313 = vpack.c.b16 %v302, %v301
  %v314 = vpack.c.b16 %v304, %v303
  %v315 = vpack.c.b16 %v305, %v305
  %v326 = vsel %vm106, %v315, 0
  %328 = vmatpush.bf16.msra.mxu0 %v313
  %329 = vmatpush.bf16.msra.mxu0 %v312
  %330 = vmatpush.bf16.msra.mxu0 %v311
  %331 = vmatpush.bf16.msra.mxu0 %v310
  %332 = vmatpush.bf16.msra.mxu0 %v309
  %333 = vmatpush.bf16.msra.mxu0 %v308
  %334 = vmatpush.bf16.msra.mxu0 %v307
  %335 = vmatpush.bf16.msra.mxu0 %v306
  %336 = vmatmul.bf16.gmra.mxu0 %v42
  %v337 = vpop.f32.mrf.mxu0
  %v338 = vadd.f32 0.0, %v337
  %v339 = vpop.f32.mrf.mxu0
  %v340 = vadd.f32 0.0, %v339
  %341 = vdwg.mxu0
  %342 = vmatpush.bf16.msra.mxu0 0
  %343 = vmatpush.bf16.msra.mxu0 0
  %344 = vmatpush.bf16.msra.mxu0 0
  %345 = vmatpush.bf16.msra.mxu0 0
  %346 = vmatpush.bf16.msra.mxu0 0
  %347 = vmatpush.bf16.msra.mxu0 0
  %348 = vmatpush.bf16.msra.mxu0 %v326
  %349 = vmatpush.bf16.msra.mxu0 %v314
  %350 = vmatmul.bf16.gmra.mxu0 %v104
  %v351 = vpop.f32.mrf.mxu0
  %v352 = vadd.f32 %v338, %v351
  %v353 = vpop.f32.mrf.mxu0
  %v354 = vadd.f32 %v340, %v353
  %355 = vdwg.mxu0
  %v356 = vmax.f32 %v246, %v352
  %v357 = vmax.f32 %v247, %v354
  %s358 = scalar_lea.vmem %s0, 228
  %v359 = vld [vmem:[%s358] sm:$0xf]
  %v360 = vld [vmem:[%s358 + $0x4] sm:$0xf]
  %v361 = vld [vmem:[%s358 + $0x8] sm:$0xf]
  %v362 = vld [vmem:[%s358 + $0xc] sm:$0xf]
  %v363 = vld [vmem:[%s358 + $0x10] sm:$0xf]
  %v364 = vld [vmem:[%s358 + $0x14] sm:$0xf]
  %v365 = vld [vmem:[%s358 + $0x18] sm:$0xf]
  %v366 = vld [vmem:[%s358 + $0x1c] sm:$0xf]
  %v367 = vld [vmem:[%s358 + $0x20] sm:$0xf]
  %v368 = vld [vmem:[%s358 + $0x24] sm:$0xf]
  %v369 = vld [vmem:[%s358 + $0x28] sm:$0xf]
  %v370 = vld [vmem:[%s358 + $0x2c] sm:$0xf]
  %v371 = vld [vmem:[%s358 + $0x30] sm:$0xf]
  %v372 = vld [vmem:[%s358 + $0x34] sm:$0xf]
  %v373 = vld [vmem:[%s358 + $0x38] sm:$0xf]
  %v374 = vld [vmem:[%s358 + $0x3c] sm:$0xf]
  %v375 = vld [vmem:[%s358 + $0x40] sm:$0xf]
  %v376 = vld [vmem:[%s358 + $0x44] sm:$0xf]
  %v377 = vld [vmem:[%s358 + $0x48] sm:$0x7]
  %v397 = vunpack.c.l.b16 %v359
  %v398 = vunpack.c.l.b16 %v360
  %v399 = vunpack.c.l.b16 %v361
  %v400 = vunpack.c.l.b16 %v362
  %v401 = vunpack.c.l.b16 %v363
  %v402 = vunpack.c.l.b16 %v364
  %v403 = vunpack.c.l.b16 %v365
  %v404 = vunpack.c.l.b16 %v366
  %v405 = vunpack.c.l.b16 %v367
  %v406 = vunpack.c.l.b16 %v368
  %v407 = vunpack.c.l.b16 %v369
  %v408 = vunpack.c.l.b16 %v370
  %v409 = vunpack.c.l.b16 %v371
  %v410 = vunpack.c.l.b16 %v372
  %v411 = vunpack.c.l.b16 %v373
  %v412 = vunpack.c.l.b16 %v374
  %v413 = vunpack.c.l.b16 %v375
  %v414 = vunpack.c.l.b16 %v376
  %v415 = vunpack.c.l.b16 %v377
  %v416 = vpack.c.b16 %v398, %v397
  %v417 = vpack.c.b16 %v400, %v399
  %v418 = vpack.c.b16 %v402, %v401
  %v419 = vpack.c.b16 %v404, %v403
  %v420 = vpack.c.b16 %v406, %v405
  %v421 = vpack.c.b16 %v408, %v407
  %v422 = vpack.c.b16 %v410, %v409
  %v423 = vpack.c.b16 %v412, %v411
  %v424 = vpack.c.b16 %v414, %v413
  %v425 = vpack.c.b16 %v415, %v415
  %v436 = vsel %vm106, %v425, 0
  %438 = vmatpush.bf16.msra.mxu0 %v423
  %439 = vmatpush.bf16.msra.mxu0 %v422
  %440 = vmatpush.bf16.msra.mxu0 %v421
  %441 = vmatpush.bf16.msra.mxu0 %v420
  %442 = vmatpush.bf16.msra.mxu0 %v419
  %443 = vmatpush.bf16.msra.mxu0 %v418
  %444 = vmatpush.bf16.msra.mxu0 %v417
  %445 = vmatpush.bf16.msra.mxu0 %v416
  %446 = vmatmul.bf16.gmra.mxu0 %v42
  %v447 = vpop.f32.mrf.mxu0
  %v448 = vadd.f32 0.0, %v447
  %v449 = vpop.f32.mrf.mxu0
  %v450 = vadd.f32 0.0, %v449
  %451 = vdwg.mxu0
  %452 = vmatpush.bf16.msra.mxu0 0
  %453 = vmatpush.bf16.msra.mxu0 0
  %454 = vmatpush.bf16.msra.mxu0 0
  %455 = vmatpush.bf16.msra.mxu0 0
  %456 = vmatpush.bf16.msra.mxu0 0
  %457 = vmatpush.bf16.msra.mxu0 0
  %458 = vmatpush.bf16.msra.mxu0 %v436
  %459 = vmatpush.bf16.msra.mxu0 %v424
  %460 = vmatmul.bf16.gmra.mxu0 %v104
  %v461 = vpop.f32.mrf.mxu0
  %v462 = vadd.f32 %v448, %v461
  %v463 = vpop.f32.mrf.mxu0
  %v464 = vadd.f32 %v450, %v463
  %465 = vdwg.mxu0
  %v466 = vmax.f32 %v356, %v462
  %v467 = vmax.f32 %v357, %v464
  %v468 = vld [vmem:[%s2] sm:$0xff]
  %v469 = vld [vmem:[%s2 + $0x8] sm:$0xff]
  %471 = vset.pattern.permute.xlu0 0
  %472 = vperm.xlu0 %471, %v468
  %v473 = vpop.permute.xlu0 %472
  %476 = vset.pattern.permute.xlu0 0
  %477 = vperm.xlu0 %476, %v469
  %v478 = vpop.permute.xlu0 %477
  %v480 = vadd.f32 %v466, %v473
  %v481 = vadd.f32 %v467, %v478
  %v482 = vmax.f32 %v480, 0.0
  %v483 = vmax.f32 %v481, 0.0
  %v484 = vpack.c.bf16 %v482, %v482
  %v485 = vpack.c.bf16 %v483, %v483
  %vm486 = vcmask 404480
  %487 = vst.msk [vmem:[%s3] sm:$0xf] %vm486, %v484
  %488 = vst.msk [vmem:[%s3 + $0x4] sm:$0xf] %vm486, %v485
  // Predicated region
  $region14: #{binary_classifier_forward.4} parent=0 // pred_check
    _
  $region15: #{binary_classifier_forward.4} parent=0 // pred_check_branch
    %490 = sbr.rel (0) target = $region17
  $region16: #{binary_classifier_forward.4} parent=0 // pred_region
    _
  $region17: #{binary_classifier_forward.4} parent=0 // pred_fallthru
    _
  // Predicated region
  $region18: #{binary_classifier_forward.4} parent=0 // pred_check
    _
  $region19: #{binary_classifier_forward.4} parent=0 // pred_check_branch
    %492 = sbr.rel (0) target = $region21
  $region20: #{binary_classifier_forward.4} parent=0 // pred_region
    _
  $region21: #{binary_classifier_forward.4} parent=0 // pred_fallthru
    _

// kernel: binary_classifier_forward.5
$region0: #{binary_classifier_forward.5}
  #allocation0 [shape = 'u32[]', space=smem, size = 0x4, offset = 0x4, fixed_abs, tag = 'smem constant byte address 0x4 - core index']
  #allocation1 [shape = 'u32[72,128]{1,0:T(1,128)}', space=vmem, size = 0x9000, scoped, tag = 'internal scratch']
  %s0 = inlined_call_operand.vmem [shape: bf16[400,2], index: 0, kind: input, shape index: {}]
  %s1 = inlined_call_operand.vmem [shape: bf16[100,400], index: 1, kind: input, shape index: {}]
  %s2 = inlined_call_operand.vmem [shape: f32[100,1], index: 2, kind: input, shape index: {}]
  %s3 = inlined_call_operand.vmem [shape: bf16[20,100], index: 3, kind: input, shape index: {}]
  %s4 = inlined_call_operand.vmem [shape: f32[20,1], index: 4, kind: input, shape index: {}]
  %s5 = inlined_call_operand.vmem [shape: bf16[2,20], index: 5, kind: input, shape index: {}]
  %s6 = inlined_call_operand.vmem [shape: f32[2,1], index: 6, kind: input, shape index: {}]
  %s7 = inlined_call_operand.vmem [shape: f32[2,2], index: 7, kind: output, shape index: {}]
  %s8 = sld [smem:[#allocation0]]
  $region38: #{binary_classifier_forward.5} parent=0
    _
  %s10 = ssub.s32 1, %s8
  %s11 = scalar_select 0, %s10, %s8
  // Predicated region
  $region2: #{binary_classifier_forward.5} parent=0 // pred_check
    _
  $region3: #{binary_classifier_forward.5} parent=0 // pred_check_branch
    %13 = sbr.rel (0) target = $region5
  $region4: #{binary_classifier_forward.5} parent=0 // pred_region
    _
  $region5: #{binary_classifier_forward.5} parent=0 // pred_fallthru
    _
  // Predicated region
  $region6: #{binary_classifier_forward.5} parent=0 // pred_check
    _
  $region7: #{binary_classifier_forward.5} parent=0 // pred_check_branch
    %15 = sbr.rel (0) target = $region9
  $region8: #{binary_classifier_forward.5} parent=0 // pred_region
    _
  $region9: #{binary_classifier_forward.5} parent=0 // pred_fallthru
    _
  // Predicated region
  $region10: #{binary_classifier_forward.5} parent=0 // pred_check
    _
  $region11: #{binary_classifier_forward.5} parent=0 // pred_check_branch
    %17 = sbr.rel (0) target = $region13
  $region12: #{binary_classifier_forward.5} parent=0 // pred_region
    _
  $region13: #{binary_classifier_forward.5} parent=0 // pred_fallthru
    _
  // Predicated region
  $region14: #{binary_classifier_forward.5} parent=0 // pred_check
    _
  $region15: #{binary_classifier_forward.5} parent=0 // pred_check_branch
    %19 = sbr.rel (0) target = $region17
  $region16: #{binary_classifier_forward.5} parent=0 // pred_region
    _
  $region17: #{binary_classifier_forward.5} parent=0 // pred_fallthru
    _
  // Predicated region
  $region18: #{binary_classifier_forward.5} parent=0 // pred_check
    _
  $region19: #{binary_classifier_forward.5} parent=0 // pred_check_branch
    %21 = sbr.rel (0) target = $region21
  $region20: #{binary_classifier_forward.5} parent=0 // pred_region
    _
  $region21: #{binary_classifier_forward.5} parent=0 // pred_fallthru
    _
  // Predicated region
  $region22: #{binary_classifier_forward.5} parent=0 // pred_check
    _
  $region23: #{binary_classifier_forward.5} parent=0 // pred_check_branch
    %23 = sbr.rel (0) target = $region25
  $region24: #{binary_classifier_forward.5} parent=0 // pred_region
    _
  $region25: #{binary_classifier_forward.5} parent=0 // pred_fallthru
    _
  // Predicated region
  $region26: #{binary_classifier_forward.5} parent=0 // pred_check
    _
  $region27: #{binary_classifier_forward.5} parent=0 // pred_check_branch
    %25 = sbr.rel (0) target = $region29
  $region28: #{binary_classifier_forward.5} parent=0 // pred_region
    _
  $region29: #{binary_classifier_forward.5} parent=0 // pred_fallthru
    _
  %v27 = vld [vmem:[%s1] sm:$0xff]
  %v28 = vld [vmem:[%s1 + $0x8] sm:$0xff]
  %v29 = vld [vmem:[%s1 + $0x10] sm:$0xff]
  %v30 = vld [vmem:[%s1 + $0x18] sm:$0xff]
  %v31 = vld [vmem:[%s1 + $0x20] sm:$0xff]
  %v32 = vld [vmem:[%s1 + $0x28] sm:$0xff]
  %v33 = vld [vmem:[%s1 + $0x30] sm:$0xff]
  %v34 = vld [vmem:[%s1 + $0x38] sm:$0xff]
  %v35 = vld [vmem:[%s1 + $0x40] sm:$0xff]
  %v36 = vld [vmem:[%s1 + $0x48] sm:$0xff]
  %v37 = vld [vmem:[%s1 + $0x50] sm:$0xff]
  %v38 = vld [vmem:[%s1 + $0x58] sm:$0xff]
  %v39 = vld [vmem:[%s1 + $0x60] sm:$0xff]
  %v40 = vld [vmem:[%s1 + $0x68] sm:$0xff]
  %v41 = vld [vmem:[%s1 + $0x70] sm:$0xff]
  %v42 = vld [vmem:[%s1 + $0x78] sm:$0xff]
  %v43 = vld [vmem:[%s1 + $0x80] sm:$0xff]
  %v44 = vld [vmem:[%s1 + $0x88] sm:$0xff]
  %v45 = vld [vmem:[%s1 + $0x90] sm:$0xff]
  %v46 = vld [vmem:[%s1 + $0x98] sm:$0xff]
  %v47 = vld [vmem:[%s1 + $0xa0] sm:$0xff]
  %v48 = vld [vmem:[%s1 + $0xa8] sm:$0xff]
  %v49 = vld [vmem:[%s1 + $0xb0] sm:$0xff]
  %v50 = vld [vmem:[%s1 + $0xb8] sm:$0xff]
  %v51 = vld [vmem:[%s1 + $0xc0] sm:$0x33]
  %v52 = vld [vmem:[%s1 + $0xc8] sm:$0x33]
  %v53 = vld [vmem:[%s0] sm:$0xf]
  %v54 = vld [vmem:[%s0 + $0x4] sm:$0xf]
  %v55 = vld [vmem:[%s0 + $0x8] sm:$0xf]
  %v56 = vld [vmem:[%s0 + $0xc] sm:$0xf]
  %v57 = vld [vmem:[%s0 + $0x10] sm:$0xf]
  %v58 = vld [vmem:[%s0 + $0x14] sm:$0xf]
  %v59 = vld [vmem:[%s0 + $0x18] sm:$0xf]
  %v60 = vld [vmem:[%s0 + $0x1c] sm:$0xf]
  %v61 = vld [vmem:[%s0 + $0x20] sm:$0xf]
  %v62 = vld [vmem:[%s0 + $0x24] sm:$0xf]
  %v63 = vld [vmem:[%s0 + $0x28] sm:$0xf]
  %v64 = vld [vmem:[%s0 + $0x2c] sm:$0xf]
  %v65 = vld [vmem:[%s0 + $0x30] sm:$0xf]
  %v66 = vld [vmem:[%s0 + $0x34] sm:$0xf]
  %v67 = vld [vmem:[%s0 + $0x38] sm:$0xf]
  %v68 = vld [vmem:[%s0 + $0x3c] sm:$0xf]
  %v69 = vld [vmem:[%s0 + $0x40] sm:$0xf]
  %v70 = vld [vmem:[%s0 + $0x44] sm:$0xf]
  %v71 = vld [vmem:[%s0 + $0x48] sm:$0xf]
  %v72 = vld [vmem:[%s0 + $0x4c] sm:$0xf]
  %v73 = vld [vmem:[%s0 + $0x50] sm:$0xf]
  %v74 = vld [vmem:[%s0 + $0x54] sm:$0xf]
  %v75 = vld [vmem:[%s0 + $0x58] sm:$0xf]
  %v76 = vld [vmem:[%s0 + $0x5c] sm:$0xf]
  %v77 = vld [vmem:[%s0 + $0x60] sm:$0xf]
  %v78 = vld [vmem:[%s0 + $0x64] sm:$0xf]
  %v79 = vld [vmem:[%s0 + $0x68] sm:$0xf]
  %v80 = vld [vmem:[%s0 + $0x6c] sm:$0xf]
  %v81 = vld [vmem:[%s0 + $0x70] sm:$0xf]
  %v82 = vld [vmem:[%s0 + $0x74] sm:$0xf]
  %v83 = vld [vmem:[%s0 + $0x78] sm:$0xf]
  %v84 = vld [vmem:[%s0 + $0x7c] sm:$0xf]
  %v85 = vld [vmem:[%s0 + $0x80] sm:$0xf]
  %v86 = vld [vmem:[%s0 + $0x84] sm:$0xf]
  %v87 = vld [vmem:[%s0 + $0x88] sm:$0xf]
  %v88 = vld [vmem:[%s0 + $0x8c] sm:$0xf]
  %v89 = vld [vmem:[%s0 + $0x90] sm:$0xf]
  %v90 = vld [vmem:[%s0 + $0x94] sm:$0xf]
  %v91 = vld [vmem:[%s0 + $0x98] sm:$0xf]
  %v92 = vld [vmem:[%s0 + $0x9c] sm:$0xf]
  %v93 = vld [vmem:[%s0 + $0xa0] sm:$0xf]
  %v94 = vld [vmem:[%s0 + $0xa4] sm:$0xf]
  %v95 = vld [vmem:[%s0 + $0xa8] sm:$0xf]
  %v96 = vld [vmem:[%s0 + $0xac] sm:$0xf]
  %v97 = vld [vmem:[%s0 + $0xb0] sm:$0xf]
  %v98 = vld [vmem:[%s0 + $0xb4] sm:$0xf]
  %v99 = vld [vmem:[%s0 + $0xb8] sm:$0xf]
  %v100 = vld [vmem:[%s0 + $0xbc] sm:$0xf]
  %v101 = vld [vmem:[%s0 + $0xc0] sm:$0xf]
  %v102 = vld [vmem:[%s0 + $0xc4] sm:$0xf]
  %v103 = vld [vmem:[%s2] sm:$0xff]
  %v104 = vld [vmem:[%s2 + $0x8] sm:$0xff]
  %v105 = vld [vmem:[%s2 + $0x10] sm:$0xff]
  %v106 = vld [vmem:[%s2 + $0x18] sm:$0xff]
  %v107 = vld [vmem:[%s2 + $0x20] sm:$0xff]
  %v108 = vld [vmem:[%s2 + $0x28] sm:$0xff]
  %v109 = vld [vmem:[%s2 + $0x30] sm:$0xff]
  %v110 = vld [vmem:[%s2 + $0x38] sm:$0xff]
  %v111 = vld [vmem:[%s2 + $0x40] sm:$0xff]
  %v112 = vld [vmem:[%s2 + $0x48] sm:$0xff]
  %v113 = vld [vmem:[%s2 + $0x50] sm:$0xff]
  %v114 = vld [vmem:[%s2 + $0x58] sm:$0xff]
  %v115 = vld [vmem:[%s2 + $0x60] sm:$0xf]
  %117 = vset.pattern.permute.xlu0 0
  %118 = vperm.xlu0 %117, %v103
  %v119 = vpop.permute.xlu0 %118
  %122 = vset.pattern.permute.xlu0 0
  %123 = vperm.xlu0 %122, %v104
  %v124 = vpop.permute.xlu0 %123
  %127 = vset.pattern.permute.xlu0 0
  %128 = vperm.xlu0 %127, %v105
  %v129 = vpop.permute.xlu0 %128
  %132 = vset.pattern.permute.xlu0 0
  %133 = vperm.xlu0 %132, %v106
  %v134 = vpop.permute.xlu0 %133
  %137 = vset.pattern.permute.xlu0 0
  %138 = vperm.xlu0 %137, %v107
  %v139 = vpop.permute.xlu0 %138
  %142 = vset.pattern.permute.xlu0 0
  %143 = vperm.xlu0 %142, %v108
  %v144 = vpop.permute.xlu0 %143
  %147 = vset.pattern.permute.xlu0 0
  %148 = vperm.xlu0 %147, %v109
  %v149 = vpop.permute.xlu0 %148
  %152 = vset.pattern.permute.xlu0 0
  %153 = vperm.xlu0 %152, %v110
  %v154 = vpop.permute.xlu0 %153
  %157 = vset.pattern.permute.xlu0 0
  %158 = vperm.xlu0 %157, %v111
  %v159 = vpop.permute.xlu0 %158
  %162 = vset.pattern.permute.xlu0 0
  %163 = vperm.xlu0 %162, %v112
  %v164 = vpop.permute.xlu0 %163
  %167 = vset.pattern.permute.xlu0 0
  %168 = vperm.xlu0 %167, %v113
  %v169 = vpop.permute.xlu0 %168
  %172 = vset.pattern.permute.xlu0 0
  %173 = vperm.xlu0 %172, %v114
  %v174 = vpop.permute.xlu0 %173
  %177 = vset.pattern.permute.xlu0 0
  %178 = vperm.xlu0 %177, %v115
  %v179 = vpop.permute.xlu0 %178
  %v207 = vunpack.c.l.b16 %v27
  %v208 = vunpack.c.h.b16 %v27
  %v209 = vunpack.c.l.b16 %v28
  %v210 = vunpack.c.h.b16 %v28
  %v211 = vunpack.c.l.b16 %v29
  %v212 = vunpack.c.h.b16 %v29
  %v213 = vunpack.c.l.b16 %v30
  %v214 = vunpack.c.h.b16 %v30
  %v215 = vunpack.c.l.b16 %v31
  %v216 = vunpack.c.h.b16 %v31
  %v217 = vunpack.c.l.b16 %v32
  %v218 = vunpack.c.h.b16 %v32
  %v219 = vunpack.c.l.b16 %v33
  %v220 = vunpack.c.h.b16 %v33
  %v221 = vunpack.c.l.b16 %v34
  %v222 = vunpack.c.h.b16 %v34
  %v223 = vunpack.c.l.b16 %v35
  %v224 = vunpack.c.h.b16 %v35
  %v225 = vunpack.c.l.b16 %v36
  %v226 = vunpack.c.h.b16 %v36
  %v227 = vunpack.c.l.b16 %v37
  %v228 = vunpack.c.h.b16 %v37
  %v229 = vunpack.c.l.b16 %v38
  %v230 = vunpack.c.h.b16 %v38
  %v231 = vunpack.c.l.b16 %v39
  %v232 = vunpack.c.h.b16 %v39
  %v233 = vunpack.c.l.b16 %v40
  %v234 = vunpack.c.h.b16 %v40
  %v235 = vunpack.c.l.b16 %v41
  %v236 = vunpack.c.h.b16 %v41
  %v237 = vunpack.c.l.b16 %v42
  %v238 = vunpack.c.h.b16 %v42
  %v239 = vunpack.c.l.b16 %v43
  %v240 = vunpack.c.h.b16 %v43
  %v241 = vunpack.c.l.b16 %v44
  %v242 = vunpack.c.h.b16 %v44
  %v243 = vunpack.c.l.b16 %v45
  %v244 = vunpack.c.h.b16 %v45
  %v245 = vunpack.c.l.b16 %v46
  %v246 = vunpack.c.h.b16 %v46
  %v247 = vunpack.c.l.b16 %v47
  %v248 = vunpack.c.h.b16 %v47
  %v249 = vunpack.c.l.b16 %v48
  %v250 = vunpack.c.h.b16 %v48
  %v251 = vunpack.c.l.b16 %v49
  %v252 = vunpack.c.h.b16 %v49
  %v253 = vunpack.c.l.b16 %v50
  %v254 = vunpack.c.h.b16 %v50
  %v255 = vunpack.c.l.b16 %v51
  %v256 = vunpack.c.h.b16 %v51
  %v257 = vunpack.c.l.b16 %v52
  %v258 = vunpack.c.h.b16 %v52
  %v259 = vpack.c.b16 %v211, %v207
  %v260 = vpack.c.b16 %v212, %v208
  %v261 = vpack.c.b16 %v213, %v209
  %v262 = vpack.c.b16 %v214, %v210
  %v263 = vpack.c.b16 %v219, %v215
  %v264 = vpack.c.b16 %v220, %v216
  %v265 = vpack.c.b16 %v221, %v217
  %v266 = vpack.c.b16 %v222, %v218
  %v267 = vpack.c.b16 %v227, %v223
  %v268 = vpack.c.b16 %v228, %v224
  %v269 = vpack.c.b16 %v229, %v225
  %v270 = vpack.c.b16 %v230, %v226
  %v271 = vpack.c.b16 %v235, %v231
  %v272 = vpack.c.b16 %v236, %v232
  %v273 = vpack.c.b16 %v237, %v233
  %v274 = vpack.c.b16 %v238, %v234
  %v275 = vpack.c.b16 %v243, %v239
  %v276 = vpack.c.b16 %v244, %v240
  %v277 = vpack.c.b16 %v245, %v241
  %v278 = vpack.c.b16 %v246, %v242
  %v279 = vpack.c.b16 %v251, %v247
  %v280 = vpack.c.b16 %v252, %v248
  %v281 = vpack.c.b16 %v253, %v249
  %v282 = vpack.c.b16 %v254, %v250
  %v283 = vpack.c.b16 %v255, %v255
  %v284 = vpack.c.b16 %v256, %v256
  %v285 = vpack.c.b16 %v257, %v257
  %v286 = vpack.c.b16 %v258, %v258
  %v358 = vunpack.c.l.b16 %v53
  %v359 = vunpack.c.l.b16 %v54
  %v360 = vunpack.c.l.b16 %v55
  %v361 = vunpack.c.l.b16 %v56
  %v362 = vunpack.c.l.b16 %v57
  %v363 = vunpack.c.l.b16 %v58
  %v364 = vunpack.c.l.b16 %v59
  %v365 = vunpack.c.l.b16 %v60
  %v366 = vunpack.c.l.b16 %v61
  %v367 = vunpack.c.l.b16 %v62
  %v368 = vunpack.c.l.b16 %v63
  %v369 = vunpack.c.l.b16 %v64
  %v370 = vunpack.c.l.b16 %v65
  %v371 = vunpack.c.l.b16 %v66
  %v372 = vunpack.c.l.b16 %v67
  %v373 = vunpack.c.l.b16 %v68
  %v374 = vunpack.c.l.b16 %v69
  %v375 = vunpack.c.l.b16 %v70
  %v376 = vunpack.c.l.b16 %v71
  %v377 = vunpack.c.l.b16 %v72
  %v378 = vunpack.c.l.b16 %v73
  %v379 = vunpack.c.l.b16 %v74
  %v380 = vunpack.c.l.b16 %v75
  %v381 = vunpack.c.l.b16 %v76
  %v382 = vunpack.c.l.b16 %v77
  %v383 = vunpack.c.l.b16 %v78
  %v384 = vunpack.c.l.b16 %v79
  %v385 = vunpack.c.l.b16 %v80
  %v386 = vunpack.c.l.b16 %v81
  %v387 = vunpack.c.l.b16 %v82
  %v388 = vunpack.c.l.b16 %v83
  %v389 = vunpack.c.l.b16 %v84
  %v390 = vunpack.c.l.b16 %v85
  %v391 = vunpack.c.l.b16 %v86
  %v392 = vunpack.c.l.b16 %v87
  %v393 = vunpack.c.l.b16 %v88
  %v394 = vunpack.c.l.b16 %v89
  %v395 = vunpack.c.l.b16 %v90
  %v396 = vunpack.c.l.b16 %v91
  %v397 = vunpack.c.l.b16 %v92
  %v398 = vunpack.c.l.b16 %v93
  %v399 = vunpack.c.l.b16 %v94
  %v400 = vunpack.c.l.b16 %v95
  %v401 = vunpack.c.l.b16 %v96
  %v402 = vunpack.c.l.b16 %v97
  %v403 = vunpack.c.l.b16 %v98
  %v404 = vunpack.c.l.b16 %v99
  %v405 = vunpack.c.l.b16 %v100
  %v406 = vunpack.c.l.b16 %v101
  %v407 = vunpack.c.l.b16 %v102
  %v408 = vpack.c.b16 %v359, %v358
  %v409 = vpack.c.b16 %v361, %v360
  %v410 = vpack.c.b16 %v363, %v362
  %v411 = vpack.c.b16 %v365, %v364
  %v412 = vpack.c.b16 %v367, %v366
  %v413 = vpack.c.b16 %v369, %v368
  %v414 = vpack.c.b16 %v371, %v370
  %v415 = vpack.c.b16 %v373, %v372
  %v416 = vpack.c.b16 %v375, %v374
  %v417 = vpack.c.b16 %v377, %v376
  %v418 = vpack.c.b16 %v379, %v378
  %v419 = vpack.c.b16 %v381, %v380
  %v420 = vpack.c.b16 %v383, %v382
  %v421 = vpack.c.b16 %v385, %v384
  %v422 = vpack.c.b16 %v387, %v386
  %v423 = vpack.c.b16 %v389, %v388
  %v424 = vpack.c.b16 %v391, %v390
  %v425 = vpack.c.b16 %v393, %v392
  %v426 = vpack.c.b16 %v395, %v394
  %v427 = vpack.c.b16 %v397, %v396
  %v428 = vpack.c.b16 %v399, %v398
  %v429 = vpack.c.b16 %v401, %v400
  %v430 = vpack.c.b16 %v403, %v402
  %v431 = vpack.c.b16 %v405, %v404
  %v432 = vpack.c.b16 %v407, %v406
  %vm458 = vcmask 130048
  %v460 = vsel %vm458, %v262, 0
  %v463 = vsel %vm458, %v266, 0
  %v466 = vsel %vm458, %v270, 0
  %v469 = vsel %vm458, %v274, 0
  %v472 = vsel %vm458, %v278, 0
  %v475 = vsel %vm458, %v282, 0
  %v478 = vsel %vm458, %v286, 0
  %480 = vmatpush.bf16.msra.mxu0 %v415
  %481 = vmatpush.bf16.msra.mxu0 %v414
  %482 = vmatpush.bf16.msra.mxu0 %v413
  %483 = vmatpush.bf16.msra.mxu0 %v412
  %484 = vmatpush.bf16.msra.mxu0 %v411
  %485 = vmatpush.bf16.msra.mxu0 %v410
  %486 = vmatpush.bf16.msra.mxu0 %v409
  %487 = vmatpush.bf16.msra.mxu0 %v408
  %488 = vmatmul.bf16.gmra.mxu0 %v259
  %v489 = vpop.f32.mrf.mxu0
  %v490 = vadd.f32 %v119, %v489
  %v491 = vpop.f32.mrf.mxu0
  %v492 = vadd.f32 %v124, %v491
  %493 = vmatmul.bf16.gmra.mxu0 %v263
  %v494 = vpop.f32.mrf.mxu0
  %v495 = vadd.f32 %v129, %v494
  %v496 = vpop.f32.mrf.mxu0
  %v497 = vadd.f32 %v134, %v496
  %498 = vmatmul.bf16.gmra.mxu0 %v267
  %v499 = vpop.f32.mrf.mxu0
  %v500 = vadd.f32 %v139, %v499
  %v501 = vpop.f32.mrf.mxu0
  %v502 = vadd.f32 %v144, %v501
  %503 = vmatmul.bf16.gmra.mxu0 %v271
  %v504 = vpop.f32.mrf.mxu0
  %v505 = vadd.f32 %v149, %v504
  %v506 = vpop.f32.mrf.mxu0
  %v507 = vadd.f32 %v154, %v506
  %508 = vmatmul.bf16.gmra.mxu0 %v275
  %v509 = vpop.f32.mrf.mxu0
  %v510 = vadd.f32 %v159, %v509
  %v511 = vpop.f32.mrf.mxu0
  %v512 = vadd.f32 %v164, %v511
  %513 = vmatmul.bf16.gmra.mxu0 %v279
  %v514 = vpop.f32.mrf.mxu0
  %v515 = vadd.f32 %v169, %v514
  %v516 = vpop.f32.mrf.mxu0
  %v517 = vadd.f32 %v174, %v516
  %518 = vmatmul.bf16.gmra.mxu0 %v283
  %v519 = vpop.f32.mrf.mxu0
  %v520 = vadd.f32 %v179, %v519
  %v521 = vpop.f32.mrf.mxu0
  %522 = vdwg.mxu0
  %523 = vmatpush.bf16.msra.mxu0 %v423
  %524 = vmatpush.bf16.msra.mxu0 %v422
  %525 = vmatpush.bf16.msra.mxu0 %v421
  %526 = vmatpush.bf16.msra.mxu0 %v420
  %527 = vmatpush.bf16.msra.mxu0 %v419
  %528 = vmatpush.bf16.msra.mxu0 %v418
  %529 = vmatpush.bf16.msra.mxu0 %v417
  %530 = vmatpush.bf16.msra.mxu0 %v416
  %531 = vmatmul.bf16.gmra.mxu0 %v260
  %v532 = vpop.f32.mrf.mxu0
  %v533 = vadd.f32 %v490, %v532
  %v534 = vpop.f32.mrf.mxu0
  %v535 = vadd.f32 %v492, %v534
  %536 = vmatmul.bf16.gmra.mxu0 %v264
  %v537 = vpop.f32.mrf.mxu0
  %v538 = vadd.f32 %v495, %v537
  %v539 = vpop.f32.mrf.mxu0
  %v540 = vadd.f32 %v497, %v539
  %541 = vmatmul.bf16.gmra.mxu0 %v268
  %v542 = vpop.f32.mrf.mxu0
  %v543 = vadd.f32 %v500, %v542
  %v544 = vpop.f32.mrf.mxu0
  %v545 = vadd.f32 %v502, %v544
  %546 = vmatmul.bf16.gmra.mxu0 %v272
  %v547 = vpop.f32.mrf.mxu0
  %v548 = vadd.f32 %v505, %v547
  %v549 = vpop.f32.mrf.mxu0
  %v550 = vadd.f32 %v507, %v549
  %551 = vmatmul.bf16.gmra.mxu0 %v276
  %v552 = vpop.f32.mrf.mxu0
  %v553 = vadd.f32 %v510, %v552
  %v554 = vpop.f32.mrf.mxu0
  %v555 = vadd.f32 %v512, %v554
  %556 = vmatmul.bf16.gmra.mxu0 %v280
  %v557 = vpop.f32.mrf.mxu0
  %v558 = vadd.f32 %v515, %v557
  %v559 = vpop.f32.mrf.mxu0
  %v560 = vadd.f32 %v517, %v559
  %561 = vmatmul.bf16.gmra.mxu0 %v284
  %v562 = vpop.f32.mrf.mxu0
  %v563 = vadd.f32 %v520, %v562
  %v564 = vpop.f32.mrf.mxu0
  %565 = vdwg.mxu0
  %566 = vmatpush.bf16.msra.mxu0 %v431
  %567 = vmatpush.bf16.msra.mxu0 %v430
  %568 = vmatpush.bf16.msra.mxu0 %v429
  %569 = vmatpush.bf16.msra.mxu0 %v428
  %570 = vmatpush.bf16.msra.mxu0 %v427
  %571 = vmatpush.bf16.msra.mxu0 %v426
  %572 = vmatpush.bf16.msra.mxu0 %v425
  %573 = vmatpush.bf16.msra.mxu0 %v424
  %574 = vmatmul.bf16.gmra.mxu0 %v261
  %v575 = vpop.f32.mrf.mxu0
  %v576 = vadd.f32 %v533, %v575
  %v577 = vpop.f32.mrf.mxu0
  %v578 = vadd.f32 %v535, %v577
  %579 = vmatmul.bf16.gmra.mxu0 %v265
  %v580 = vpop.f32.mrf.mxu0
  %v581 = vadd.f32 %v538, %v580
  %v582 = vpop.f32.mrf.mxu0
  %v583 = vadd.f32 %v540, %v582
  %584 = vmatmul.bf16.gmra.mxu0 %v269
  %v585 = vpop.f32.mrf.mxu0
  %v586 = vadd.f32 %v543, %v585
  %v587 = vpop.f32.mrf.mxu0
  %v588 = vadd.f32 %v545, %v587
  %589 = vmatmul.bf16.gmra.mxu0 %v273
  %v590 = vpop.f32.mrf.mxu0
  %v591 = vadd.f32 %v548, %v590
  %v592 = vpop.f32.mrf.mxu0
  %v593 = vadd.f32 %v550, %v592
  %594 = vmatmul.bf16.gmra.mxu0 %v277
  %v595 = vpop.f32.mrf.mxu0
  %v596 = vadd.f32 %v553, %v595
  %v597 = vpop.f32.mrf.mxu0
  %v598 = vadd.f32 %v555, %v597
  %599 = vmatmul.bf16.gmra.mxu0 %v281
  %v600 = vpop.f32.mrf.mxu0
  %v601 = vadd.f32 %v558, %v600
  %v602 = vpop.f32.mrf.mxu0
  %v603 = vadd.f32 %v560, %v602
  %604 = vmatmul.bf16.gmra.mxu0 %v285
  %v605 = vpop.f32.mrf.mxu0
  %v606 = vadd.f32 %v563, %v605
  %v607 = vpop.f32.mrf.mxu0
  %608 = vdwg.mxu0
  %609 = vmatpush.bf16.msra.mxu0 0
  %610 = vmatpush.bf16.msra.mxu0 0
  %611 = vmatpush.bf16.msra.mxu0 0
  %612 = vmatpush.bf16.msra.mxu0 0
  %613 = vmatpush.bf16.msra.mxu0 0
  %614 = vmatpush.bf16.msra.mxu0 0
  %615 = vmatpush.bf16.msra.mxu0 0
  %616 = vmatpush.bf16.msra.mxu0 %v432
  %617 = vmatmul.bf16.gmra.mxu0 %v460
  %v618 = vpop.f32.mrf.mxu0
  %v619 = vadd.f32 %v576, %v618
  %v620 = vpop.f32.mrf.mxu0
  %v621 = vadd.f32 %v578, %v620
  %622 = vmatmul.bf16.gmra.mxu0 %v463
  %v623 = vpop.f32.mrf.mxu0
  %v624 = vadd.f32 %v581, %v623
  %v625 = vpop.f32.mrf.mxu0
  %v626 = vadd.f32 %v583, %v625
  %627 = vmatmul.bf16.gmra.mxu0 %v466
  %v628 = vpop.f32.mrf.mxu0
  %v629 = vadd.f32 %v586, %v628
  %v630 = vpop.f32.mrf.mxu0
  %v631 = vadd.f32 %v588, %v630
  %632 = vmatmul.bf16.gmra.mxu0 %v469
  %v633 = vpop.f32.mrf.mxu0
  %v634 = vadd.f32 %v591, %v633
  %v635 = vpop.f32.mrf.mxu0
  %v636 = vadd.f32 %v593, %v635
  %637 = vmatmul.bf16.gmra.mxu0 %v472
  %v638 = vpop.f32.mrf.mxu0
  %v639 = vadd.f32 %v596, %v638
  %v640 = vpop.f32.mrf.mxu0
  %v641 = vadd.f32 %v598, %v640
  %642 = vmatmul.bf16.gmra.mxu0 %v475
  %v643 = vpop.f32.mrf.mxu0
  %v644 = vadd.f32 %v601, %v643
  %v645 = vpop.f32.mrf.mxu0
  %v646 = vadd.f32 %v603, %v645
  %647 = vmatmul.bf16.gmra.mxu0 %v478
  %v648 = vpop.f32.mrf.mxu0
  %v649 = vadd.f32 %v606, %v648
  %v650 = vpop.f32.mrf.mxu0
  %651 = vdwg.mxu0
  %v652 = vmax.f32 %v619, 0.0
  %v653 = vmax.f32 %v621, 0.0
  %v654 = vmax.f32 %v624, 0.0
  %v655 = vmax.f32 %v626, 0.0
  %v656 = vmax.f32 %v629, 0.0
  %v657 = vmax.f32 %v631, 0.0
  %v658 = vmax.f32 %v634, 0.0
  %v659 = vmax.f32 %v636, 0.0
  %v660 = vmax.f32 %v639, 0.0
  %v661 = vmax.f32 %v641, 0.0
  %v662 = vmax.f32 %v644, 0.0
  %v663 = vmax.f32 %v646, 0.0
  %v664 = vmax.f32 %v649, 0.0
  %v665 = vld [vmem:[%s3] sm:$0xf]
  %v666 = vld [vmem:[%s3 + $0x4] sm:$0xf]
  %v667 = vld [vmem:[%s3 + $0x8] sm:$0x3]
  %v668 = vpack.c.bf16 %v653, %v652
  %v669 = vpack.c.bf16 %v655, %v654
  %v670 = vpack.c.bf16 %v657, %v656
  %v671 = vpack.c.bf16 %v659, %v658
  %v672 = vpack.c.bf16 %v661, %v660
  %v673 = vpack.c.bf16 %v663, %v662
  %v674 = vpack.c.bf16 %v664, %v664
  %v675 = vld [vmem:[%s4] sm:$0xff]
  %v676 = vld [vmem:[%s4 + $0x8] sm:$0xff]
  %v677 = vld [vmem:[%s4 + $0x10] sm:$0xf]
  %679 = vset.pattern.permute.xlu0 0
  %680 = vperm.xlu0 %679, %v675
  %v681 = vpop.permute.xlu0 %680
  %684 = vset.pattern.permute.xlu0 0
  %685 = vperm.xlu0 %684, %v676
  %v686 = vpop.permute.xlu0 %685
  %689 = vset.pattern.permute.xlu0 0
  %690 = vperm.xlu0 %689, %v677
  %v691 = vpop.permute.xlu0 %690
  %v696 = vunpack.c.l.b16 %v665
  %v697 = vunpack.c.l.b16 %v666
  %v698 = vunpack.c.l.b16 %v667
  %v699 = vpack.c.b16 %v697, %v696
  %v700 = vpack.c.b16 %v698, %v698
  %vm701 = vcmask 818176
  %v703 = vsel %vm701, %v699, 0
  %v706 = vsel %vm701, %v700, 0
  %vm708 = vcmask 1041408
  %v710 = vsel %vm708, %v674, 0
  %712 = vmatpush.bf16.msra.mxu0 0
  %713 = vmatpush.bf16.msra.mxu0 %v710
  %714 = vmatpush.bf16.msra.mxu0 %v673
  %715 = vmatpush.bf16.msra.mxu0 %v672
  %716 = vmatpush.bf16.msra.mxu0 %v671
  %717 = vmatpush.bf16.msra.mxu0 %v670
  %718 = vmatpush.bf16.msra.mxu0 %v669
  %719 = vmatpush.bf16.msra.mxu0 %v668
  %720 = vmatmul.bf16.gmra.mxu0 %v703
  %v721 = vpop.f32.mrf.mxu0
  %v722 = vadd.f32 %v681, %v721
  %v723 = vpop.f32.mrf.mxu0
  %v724 = vadd.f32 %v686, %v723
  %725 = vmatmul.bf16.gmra.mxu0 %v706
  %v726 = vpop.f32.mrf.mxu0
  %v727 = vadd.f32 %v691, %v726
  %v728 = vpop.f32.mrf.mxu0
  %729 = vdwg.mxu0
  %v730 = vmax.f32 %v722, 0.0
  %v731 = vmax.f32 %v724, 0.0
  %v732 = vmax.f32 %v727, 0.0
  %v733 = vld [vmem:[%s5] sm:$0x1]
  %v734 = vpack.c.bf16 %v731, %v730
  %v735 = vpack.c.bf16 %v732, %v732
  %v736 = vld [vmem:[%s6] sm:$0x3]
  %738 = vset.pattern.permute.xlu0 0
  %739 = vperm.xlu0 %738, %v736
  %v740 = vpop.permute.xlu0 %739
  %vm742 = vcmask 162816
  %v744 = vsel %vm742, %v733, 0
  %v747 = vsel %vm708, %v735, 0
  %749 = vmatpush.bf16.msra.mxu0 0
  %750 = vmatpush.bf16.msra.mxu0 0
  %751 = vmatpush.bf16.msra.mxu0 0
  %752 = vmatpush.bf16.msra.mxu0 0
  %753 = vmatpush.bf16.msra.mxu0 0
  %754 = vmatpush.bf16.msra.mxu0 0
  %755 = vmatpush.bf16.msra.mxu0 %v747
  %756 = vmatpush.bf16.msra.mxu0 %v734
  %757 = vmatmul.bf16.gmra.mxu0 %v744
  %v758 = vpop.f32.mrf.mxu0
  %v759 = vadd.f32 %v740, %v758
  %v760 = vpop.f32.mrf.mxu0
  %761 = vdwg.mxu0
  %vm762 = vcmask 9216
  %763 = vst.msk [vmem:[%s7] sm:$0x3] %vm762, %v759
  // Predicated region
  $region30: #{binary_classifier_forward.5} parent=0 // pred_check
    _
  $region31: #{binary_classifier_forward.5} parent=0 // pred_check_branch
    %765 = sbr.rel (0) target = $region33
  $region32: #{binary_classifier_forward.5} parent=0 // pred_region
    _
  $region33: #{binary_classifier_forward.5} parent=0 // pred_fallthru
    _
  // Predicated region
  $region34: #{binary_classifier_forward.5} parent=0 // pred_check
    _
  $region35: #{binary_classifier_forward.5} parent=0 // pred_check_branch
    %767 = sbr.rel (0) target = $region37
  $region36: #{binary_classifier_forward.5} parent=0 // pred_region
    _
  $region37: #{binary_classifier_forward.5} parent=0 // pred_fallthru
    _

</llo_original>
